<compile_context>
chip_gen: v7x
topology: tpu7x:2x2x1
jax: 0.10.0
libtpu: 0.0.40
codegen_flags: <defaults>
</compile_context>

<pallas_src>
import jax
import jax.numpy as jnp
from jax.experimental import pallas as pl
from jax.experimental.pallas import tpu as pltpu

D_IN = 784

# Layer dimensions (in_features, out_features) of the original PyTorch module.
LAYER_DIMS = [
    (784, 128), (128, 64), (64, 12), (12, 3),      # encoder
    (3, 12), (12, 64), (64, 128), (128, 784),      # decoder
]

# Packed mid-weight blob layout: (row_offset, rows, cols, bias_row).
# Row offsets are 8-aligned so in-kernel static slices stay sublane-friendly.
_MID_LAYOUT = [
    (0,   128, 64,  1),   # w2  (128, 64)
    (128, 64,  12,  2),   # w3  (64, 12)
    (192, 12,  12,  3),   # w45 (12, 12)  fused enc-L4 @ dec-L5
    (208, 12,  64,  4),   # w6  (12, 64)
    (224, 64,  128, 5),   # w7  (64, 128)
]
_MID_ROWS = 288
_MID_COLS = 128
_NUM_BIAS_ROWS = 7        # b1, b2, b3, b45, b6, b7, b8


def _round_up(x, m):
    return ((x + m - 1) // m) * m


def prepare_params(params):
    """One-time parameter packing (call once, NOT per forward call).

    params: list of 8 (W, b) pairs with W:(in, out), b:(1, out)
            -- i.e. already transposed from PyTorch Linear's (out,in)/(out,).

    Returns (w1, w8, w_mid, biases):
      w1     (784, 128) float32
      w8     (128, 784) float32
      w_mid  (288, 128) float32   packed w2/w3/w45/w6/w7 (zero padded)
      biases (7, 784)   float32   rows b1,b2,b3,b45,b6,b7,b8 (zero padded)
    """
    (w1, b1), (w2, b2), (w3, b3), (w4, b4), (w5, b5), (w6, b6), (w7, b7), (w8, b8) = params

    # Fuse encoder layer 4 with decoder layer 5 (no activation between them).
    w45 = jnp.dot(w4, w5, preferred_element_type=jnp.float32)        # (12, 12)
    b45 = jnp.dot(b4, w5, preferred_element_type=jnp.float32) + b5   # (1, 12)

    mid_ws = [w2, w3, w45, w6, w7]
    w_mid = jnp.zeros((_MID_ROWS, _MID_COLS), jnp.float32)
    for (row0, rows, cols, _), w in zip(_MID_LAYOUT, mid_ws):
        assert w.shape == (rows, cols), (w.shape, (rows, cols))
        w_mid = w_mid.at[row0:row0 + rows, :cols].set(w.astype(jnp.float32))

    biases = jnp.zeros((_NUM_BIAS_ROWS, D_IN), jnp.float32)
    for row, b in enumerate([b1, b2, b3, b45, b6, b7, b8]):
        biases = biases.at[row:row + 1, :b.shape[1]].set(b.astype(jnp.float32))

    return (w1.astype(jnp.float32), w8.astype(jnp.float32), w_mid, biases)


def _autoencoder_kernel(x_ref, w1_ref, w8_ref, wmid_ref, bias_ref, out_ref):
    """Fused 7-layer MLP (layers 4/5 pre-fused) for one (tile, 784) batch block."""
    h = x_ref[...]

    # Layer 1: 784 -> 128, ReLU. MXU matmul with f32 accumulation.
    h = jnp.maximum(
        jnp.dot(h, w1_ref[...], preferred_element_type=jnp.float32)
        + bias_ref[0:1, 0:128],
        0.0)

    # Middle layers from the packed blob (static ref slices, no runtime cost).
    for (row0, rows, cols, brow) in _MID_LAYOUT:
        w = wmid_ref[row0:row0 + rows, 0:cols]
        b = bias_ref[brow:brow + 1, 0:cols]
        h = jnp.maximum(
            jnp.dot(h, w, preferred_element_type=jnp.float32) + b, 0.0)

    # Layer 8: 128 -> 784, Tanh (EUP).
    h = jnp.tanh(
        jnp.dot(h, w8_ref[...], preferred_element_type=jnp.float32)
        + bias_ref[6:7, :])

    out_ref[...] = h.astype(out_ref.dtype)


def autoencoder_forward(x, packed_params, *, batch_tile=512):
    """Run the fused autoencoder kernel.

    x:             (B, 784) float array
    packed_params: output of prepare_params()
    """
    w1, w8, w_mid, biases = packed_params
    B, D = x.shape
    assert D == D_IN

    # Tile selection: large tiles for DMA efficiency, but keep >= 2 grid
    # blocks whenever possible (so both v7x TensorCores get work); always a
    # multiple of 8 so the block sublane constraint is satisfied.
    batch_tile = max(_round_up(batch_tile, 8), 8)
    tile = min(batch_tile, _round_up(pl.cdiv(B, 2), 8))
    grid_m = pl.cdiv(B, tile)   # last block may be ragged; Pallas masks it

    x = x.astype(jnp.float32)

    # ---- cost estimate & VMEM budget ----
    fused_dims = [(D_IN, 128), (128, 64), (64, 12), (12, 12),
                  (12, 64), (64, 128), (128, D_IN)]
    flops = 2 * B * sum(di * do for di, do in fused_dims)
    param_bytes = 4 * (w1.size + w8.size + w_mid.size + biases.size)
    bytes_accessed = 2 * B * D_IN * 4 + param_bytes
    cost = pl.CostEstimate(flops=flops,
                           transcendentals=B * D_IN,
                           bytes_accessed=bytes_accessed)

    tile_bytes = tile * D_IN * 4
    # double-buffered in/out tiles + (conservatively double-buffered) params.
    vmem_need = 4 * tile_bytes + 2 * param_bytes + (2 << 20)
    vmem_limit = int(min(max(vmem_need, 8 << 20), 64 << 20))

    out = pl.pallas_call(
        _autoencoder_kernel,
        out_shape=jax.ShapeDtypeStruct((B, D_IN), jnp.float32),
        grid_spec=pltpu.PrefetchScalarGridSpec(
            num_scalar_prefetch=0,
            grid=(grid_m,),
            in_specs=[
                pl.BlockSpec((tile, D_IN), lambda i: (i, 0)),   # x batch tile
                pl.BlockSpec(w1.shape, lambda i: (0, 0)),       # w1 (784,128)
                pl.BlockSpec(w8.shape, lambda i: (0, 0)),       # w8 (128,784)
                pl.BlockSpec(w_mid.shape, lambda i: (0, 0)),    # packed mid weights
                pl.BlockSpec(biases.shape, lambda i: (0, 0)),   # packed biases
            ],
            out_specs=pl.BlockSpec((tile, D_IN), lambda i: (i, 0)),
        ),
        compiler_params=pltpu.CompilerParams(
            dimension_semantics=("parallel",),
            vmem_limit_bytes=vmem_limit,
        ),
        cost_estimate=cost,
    )(x, w1, w8, w_mid, biases)

    return out


def init_params(key):
    """Deterministic init mimicking nn.Linear's default (uniform +/- 1/sqrt(fan_in)).

    Note: stored as W:(in, out), b:(1, out). Real PyTorch Linear weights are
    (out, in)/(out,) and must be transposed/reshaped when importing.
    """
    params = []
    for (d_in, d_out) in LAYER_DIMS:
        key, kw, kb = jax.random.split(key, 3)
        bound = 1.0 / jnp.sqrt(jnp.float32(d_in))
        w = jax.random.uniform(kw, (d_in, d_out), jnp.float32, -bound, bound)
        b = jax.random.uniform(kb, (1, d_out), jnp.float32, -bound, bound)
        params.append((w, b))
    return params


def reference_forward(x, params):
    """Plain-JAX reference matching the PyTorch module exactly (no fusion/packing)."""
    h = x
    for i in range(3):                       # encoder with ReLU
        w, b = params[i]
        h = jnp.maximum(h @ w + b, 0.0)
    w, b = params[3]                         # latent (no activation)
    h = h @ w + b
    for i in range(4, 7):                    # decoder with ReLU
        w, b = params[i]
        h = jnp.maximum(h @ w + b, 0.0)
    w, b = params[7]                         # final Tanh
    h = jnp.tanh(h @ w + b)
    return h


if __name__ == "__main__":
    key = jax.random.PRNGKey(0)
    key, kx = jax.random.split(key)

    # Small demo batch; deliberately NOT a multiple of the tile size to
    # exercise the ragged-last-block path and the >=2-block grid.
    B = 37
    x = jax.random.normal(kx, (B, D_IN), jnp.float32)

    params = init_params(key)
    packed = prepare_params(params)          # one-time packing, outside forward

    out = jax.block_until_ready(autoencoder_forward(x, packed, batch_tile=512))

    ref = reference_forward(x, params)
    assert out.shape == (B, D_IN), out.shape
    max_err = float(jnp.max(jnp.abs(out - ref)))
    assert jnp.allclose(out, ref, atol=1e-4, rtol=1e-4), f"max abs err {max_err}"

    print("KERNEL_OK")
</pallas_src>

<mosaic_0001>
module attributes {stable_mosaic.version = 11 : i64} {
  func.func @_autoencoder_kernel(%arg0: i32, %arg1: memref<24x784xf32, #tpu.memory_space<vmem>>, %arg2: memref<784x128xf32, #tpu.memory_space<vmem>>, %arg3: memref<128x784xf32, #tpu.memory_space<vmem>>, %arg4: memref<288x128xf32, #tpu.memory_space<vmem>>, %arg5: memref<7x784xf32, #tpu.memory_space<vmem>>, %arg6: memref<24x784xf32, #tpu.memory_space<vmem>>) attributes {dimension_semantics = [#tpu.dimension_semantics<parallel>], iteration_bounds = array<i64: 2>, scalar_prefetch = 0 : i64, scratch_operands = 0 : i64, tpu.core_type = #tpu.core_type<tc>, window_params = [{transform_indices = @transform_0, window_bounds = array<i64: 24, 784>}, {pipeline_mode = #tpu.pipeline_mode<synchronous>, transform_indices = @transform_1, window_bounds = array<i64: 784, 128>}, {pipeline_mode = #tpu.pipeline_mode<synchronous>, transform_indices = @transform_2, window_bounds = array<i64: 128, 784>}, {pipeline_mode = #tpu.pipeline_mode<synchronous>, transform_indices = @transform_3, window_bounds = array<i64: 288, 128>}, {pipeline_mode = #tpu.pipeline_mode<synchronous>, transform_indices = @transform_4, window_bounds = array<i64: 7, 784>}, {transform_indices = @transform_5, window_bounds = array<i64: 24, 784>}]} {
    %c0 = arith.constant 0 : index
    %c0_0 = arith.constant 0 : index
    %0 = vector.load %arg1[%c0, %c0_0] : memref<24x784xf32, #tpu.memory_space<vmem>>, vector<24x784xf32>
    %c0_1 = arith.constant 0 : index
    %c0_2 = arith.constant 0 : index
    %1 = vector.load %arg2[%c0_1, %c0_2] : memref<784x128xf32, #tpu.memory_space<vmem>>, vector<784x128xf32>
    %cst = arith.constant dense<0.000000e+00> : vector<24x128xf32>
    %2 = tpu.matmul %0, %1, %cst {dimension_numbers = #tpu.dot_dimension_numbers<[1], [0], [0], [1], [0, 0, 1, 1], [], []>} : vector<24x784xf32>, vector<784x128xf32>, vector<24x128xf32> -> vector<24x128xf32>
    %c0_3 = arith.constant 0 : index
    %c0_4 = arith.constant 0 : index
    %3 = vector.load %arg5[%c0_3, %c0_4] : memref<7x784xf32, #tpu.memory_space<vmem>>, vector<1x128xf32>
    %4 = vector.broadcast %3 : vector<1x128xf32> to vector<24x128xf32>
    %5 = arith.addf %2, %4 : vector<24x128xf32>
    %cst_5 = arith.constant 0.000000e+00 : f32
    %6 = vector.broadcast %cst_5 : f32 to vector<24x128xf32>
    %7 = arith.maximumf %5, %6 : vector<24x128xf32>
    %c0_6 = arith.constant 0 : index
    %c0_7 = arith.constant 0 : index
    %8 = vector.load %arg4[%c0_6, %c0_7] : memref<288x128xf32, #tpu.memory_space<vmem>>, vector<128x64xf32>
    %c1 = arith.constant 1 : index
    %c0_8 = arith.constant 0 : index
    %9 = vector.load %arg5[%c1, %c0_8] : memref<7x784xf32, #tpu.memory_space<vmem>>, vector<1x64xf32>
    %cst_9 = arith.constant dense<0.000000e+00> : vector<24x64xf32>
    %10 = tpu.matmul %7, %8, %cst_9 {dimension_numbers = #tpu.dot_dimension_numbers<[1], [0], [0], [1], [0, 0, 1, 1], [], []>} : vector<24x128xf32>, vector<128x64xf32>, vector<24x64xf32> -> vector<24x64xf32>
    %11 = vector.broadcast %9 : vector<1x64xf32> to vector<24x64xf32>
    %12 = arith.addf %10, %11 : vector<24x64xf32>
    %cst_10 = arith.constant 0.000000e+00 : f32
    %13 = vector.broadcast %cst_10 : f32 to vector<24x64xf32>
    %14 = arith.maximumf %12, %13 : vector<24x64xf32>
    %c128 = arith.constant 128 : index
    %c0_11 = arith.constant 0 : index
    %15 = vector.load %arg4[%c128, %c0_11] : memref<288x128xf32, #tpu.memory_space<vmem>>, vector<64x12xf32>
    %c2 = arith.constant 2 : index
    %c0_12 = arith.constant 0 : index
    %16 = vector.load %arg5[%c2, %c0_12] : memref<7x784xf32, #tpu.memory_space<vmem>>, vector<1x12xf32>
    %cst_13 = arith.constant dense<0.000000e+00> : vector<24x12xf32>
    %17 = tpu.matmul %14, %15, %cst_13 {dimension_numbers = #tpu.dot_dimension_numbers<[1], [0], [0], [1], [0, 0, 1, 1], [], []>} : vector<24x64xf32>, vector<64x12xf32>, vector<24x12xf32> -> vector<24x12xf32>
    %18 = vector.broadcast %16 : vector<1x12xf32> to vector<24x12xf32>
    %19 = arith.addf %17, %18 : vector<24x12xf32>
    %cst_14 = arith.constant 0.000000e+00 : f32
    %20 = vector.broadcast %cst_14 : f32 to vector<24x12xf32>
    %21 = arith.maximumf %19, %20 : vector<24x12xf32>
    %c192 = arith.constant 192 : index
    %c0_15 = arith.constant 0 : index
    %22 = vector.load %arg4[%c192, %c0_15] : memref<288x128xf32, #tpu.memory_space<vmem>>, vector<12x12xf32>
    %c3 = arith.constant 3 : index
    %c0_16 = arith.constant 0 : index
    %23 = vector.load %arg5[%c3, %c0_16] : memref<7x784xf32, #tpu.memory_space<vmem>>, vector<1x12xf32>
    %cst_17 = arith.constant dense<0.000000e+00> : vector<24x12xf32>
    %24 = tpu.matmul %21, %22, %cst_17 {dimension_numbers = #tpu.dot_dimension_numbers<[1], [0], [0], [1], [0, 0, 1, 1], [], []>} : vector<24x12xf32>, vector<12x12xf32>, vector<24x12xf32> -> vector<24x12xf32>
    %25 = vector.broadcast %23 : vector<1x12xf32> to vector<24x12xf32>
    %26 = arith.addf %24, %25 : vector<24x12xf32>
    %cst_18 = arith.constant 0.000000e+00 : f32
    %27 = vector.broadcast %cst_18 : f32 to vector<24x12xf32>
    %28 = arith.maximumf %26, %27 : vector<24x12xf32>
    %c208 = arith.constant 208 : index
    %c0_19 = arith.constant 0 : index
    %29 = vector.load %arg4[%c208, %c0_19] : memref<288x128xf32, #tpu.memory_space<vmem>>, vector<12x64xf32>
    %c4 = arith.constant 4 : index
    %c0_20 = arith.constant 0 : index
    %30 = vector.load %arg5[%c4, %c0_20] : memref<7x784xf32, #tpu.memory_space<vmem>>, vector<1x64xf32>
    %cst_21 = arith.constant dense<0.000000e+00> : vector<24x64xf32>
    %31 = tpu.matmul %28, %29, %cst_21 {dimension_numbers = #tpu.dot_dimension_numbers<[1], [0], [0], [1], [0, 0, 1, 1], [], []>} : vector<24x12xf32>, vector<12x64xf32>, vector<24x64xf32> -> vector<24x64xf32>
    %32 = vector.broadcast %30 : vector<1x64xf32> to vector<24x64xf32>
    %33 = arith.addf %31, %32 : vector<24x64xf32>
    %cst_22 = arith.constant 0.000000e+00 : f32
    %34 = vector.broadcast %cst_22 : f32 to vector<24x64xf32>
    %35 = arith.maximumf %33, %34 : vector<24x64xf32>
    %c224 = arith.constant 224 : index
    %c0_23 = arith.constant 0 : index
    %36 = vector.load %arg4[%c224, %c0_23] : memref<288x128xf32, #tpu.memory_space<vmem>>, vector<64x128xf32>
    %c5 = arith.constant 5 : index
    %c0_24 = arith.constant 0 : index
    %37 = vector.load %arg5[%c5, %c0_24] : memref<7x784xf32, #tpu.memory_space<vmem>>, vector<1x128xf32>
    %cst_25 = arith.constant dense<0.000000e+00> : vector<24x128xf32>
    %38 = tpu.matmul %35, %36, %cst_25 {dimension_numbers = #tpu.dot_dimension_numbers<[1], [0], [0], [1], [0, 0, 1, 1], [], []>} : vector<24x64xf32>, vector<64x128xf32>, vector<24x128xf32> -> vector<24x128xf32>
    %39 = vector.broadcast %37 : vector<1x128xf32> to vector<24x128xf32>
    %40 = arith.addf %38, %39 : vector<24x128xf32>
    %cst_26 = arith.constant 0.000000e+00 : f32
    %41 = vector.broadcast %cst_26 : f32 to vector<24x128xf32>
    %42 = arith.maximumf %40, %41 : vector<24x128xf32>
    %c0_27 = arith.constant 0 : index
    %c0_28 = arith.constant 0 : index
    %43 = vector.load %arg3[%c0_27, %c0_28] : memref<128x784xf32, #tpu.memory_space<vmem>>, vector<128x784xf32>
    %cst_29 = arith.constant dense<0.000000e+00> : vector<24x784xf32>
    %44 = tpu.matmul %42, %43, %cst_29 {dimension_numbers = #tpu.dot_dimension_numbers<[1], [0], [0], [1], [0, 0, 1, 1], [], []>} : vector<24x128xf32>, vector<128x784xf32>, vector<24x784xf32> -> vector<24x784xf32>
    %c6 = arith.constant 6 : index
    %c0_30 = arith.constant 0 : index
    %45 = vector.load %arg5[%c6, %c0_30] : memref<7x784xf32, #tpu.memory_space<vmem>>, vector<1x784xf32>
    %46 = vector.broadcast %45 : vector<1x784xf32> to vector<24x784xf32>
    %47 = arith.addf %44, %46 : vector<24x784xf32>
    %48 = math.tanh %47 : vector<24x784xf32>
    %c0_31 = arith.constant 0 : index
    %c0_32 = arith.constant 0 : index
    %49 = vector.load %arg6[%c0_31, %c0_32] : memref<24x784xf32, #tpu.memory_space<vmem>>, vector<24x784xf32>
    tpu.vector_store %arg6[%c0_31, %c0_32], %48 {strides = array<i32>} : memref<24x784xf32, #tpu.memory_space<vmem>>, vector<24x784xf32>,
    return
  }
  func.func @transform_0(%arg0: i32) -> (i32, i32) {
    %c0_i32 = arith.constant 0 : i32
    %c0_i32_0 = arith.constant 0 : i32
    return %arg0, %c0_i32 : i32, i32
  }
  func.func @transform_1(%arg0: i32) -> (i32, i32) {
    %c0_i32 = arith.constant 0 : i32
    %c0_i32_0 = arith.constant 0 : i32
    %c0_i32_1 = arith.constant 0 : i32
    return %c0_i32, %c0_i32_0 : i32, i32
  }
  func.func @transform_2(%arg0: i32) -> (i32, i32) {
    %c0_i32 = arith.constant 0 : i32
    %c0_i32_0 = arith.constant 0 : i32
    %c0_i32_1 = arith.constant 0 : i32
    return %c0_i32, %c0_i32_0 : i32, i32
  }
  func.func @transform_3(%arg0: i32) -> (i32, i32) {
    %c0_i32 = arith.constant 0 : i32
    %c0_i32_0 = arith.constant 0 : i32
    %c0_i32_1 = arith.constant 0 : i32
    return %c0_i32, %c0_i32_0 : i32, i32
  }
  func.func @transform_4(%arg0: i32) -> (i32, i32) {
    %c0_i32 = arith.constant 0 : i32
    %c0_i32_0 = arith.constant 0 : i32
    %c0_i32_1 = arith.constant 0 : i32
    return %c0_i32, %c0_i32_0 : i32, i32
  }
  func.func @transform_5(%arg0: i32) -> (i32, i32) {
    %c0_i32 = arith.constant 0 : i32
    %c0_i32_0 = arith.constant 0 : i32
    return %arg0, %c0_i32 : i32, i32
  }
}

</mosaic_0001>

<llo_original>
// kernel: tpu_custom_call.1
$region0: #{tpu_custom_call.1}
  #allocation0 [shape = 'u32[]', space=smem, size = 0x4, offset = 0x4, fixed_abs, tag = 'smem constant byte address 0x4 - core index']
  #allocation1 [shape = 'u32[144,128]{1,0:T(1,128)}', space=vmem, size = 0x12000, scoped, tag = 'internal scratch']
  %s0 = inlined_call_operand.vmem [shape: f32[37,784], index: 0, kind: input, shape index: {}]
  %s1 = inlined_call_operand.vmem [shape: f32[784,128], index: 1, kind: input, shape index: {}]
  %s2 = inlined_call_operand.vmem [shape: f32[128,784], index: 2, kind: input, shape index: {}]
  %s3 = inlined_call_operand.vmem [shape: f32[288,128], index: 3, kind: input, shape index: {}]
  %s4 = inlined_call_operand.vmem [shape: f32[7,784], index: 4, kind: input, shape index: {}]
  %s5 = inlined_call_operand.hbm [shape: f32[37,784], index: 5, kind: output, shape index: {}]
  %s6 = sld [smem:[#allocation0]]
  $region53: #{tpu_custom_call.1} parent=0
    _
  %s8 = ssub.s32 1, %s6
  %s9 = scalar_select 0, %s8, %s6
  $region1: #{tpu_custom_call.1} parent=0
    #allocation2 [shape = 'u8[172032]{0}', space=vmem, size = 0x2a000, scoped, tag = 'output window, operand 0']
    #allocation3 [shape = 's32[2]{0}', space=sflag, size = 0x8, scoped, tag = 'scoped memory for tpu_custom_call.1']
    %10 = vsyncpa [#allocation3], 0
    %s11 = scalar_lea.sflag [#allocation3], 1
    %12 = vsyncpa %s11, 0
    loop: start=0, step=1, limit=4
    $region2: #{tpu_custom_call.1} parent=1 // loop_pre_header
      _
    $region3: #{tpu_custom_call.1} parent=1 // loop_header
      %s14 = sphi 0, %s18
      %p15 = scmp.ge.s32.totalorder %s14, 4
      %s24 = sphi 0, %s26
      %s27 = sphi 0, %s24
      %s28 = sphi 0, %s27
      %s44 = sphi 0, %s28
      %s48 = sphi 0, %s48
      %s50 = sphi 0, %s48
      %s51 = sphi 0, %s50
      %s65 = sphi 0, %s51
      %s69 = sphi 0, %s69
      %s71 = sphi 0, %s69
      %s72 = sphi 0, %s71
      %s86 = sphi 0, %s72
      %s90 = sphi 0, %s90
      %s92 = sphi 0, %s90
      %s93 = sphi 0, %s92
      %s107 = sphi 0, %s93
      %s111 = sphi 0, %s111
      %s113 = sphi 0, %s111
      %s114 = sphi 0, %s113
      %s128 = sphi 0, %s114
      %s134 = sphi 0, %s136
      %s137 = sphi 0, %s134
      %s138 = sphi 0, %s137
      %s154 = sphi 0, %s138
    $region4: #{tpu_custom_call.1} parent=1 // loop_header_branch
      %17 = sbr.rel (%p15) target = $region8
    $region5: #{tpu_custom_call.1} parent=1 // loop_body
      %s19 = ssub.s32 %s14, 1
      %s20 = ssub.s32 %s14, 2
      %s21 = sadd.s32 %s14, 1
      %s22 = ssub.s32 %s14, %s21
      %p23 = scmp.eq.s32.totalorder %s22, 0
      %s25 = sadd.s32 %s24, 1
      %s26 = scalar_select %p23, %s24, %s25
      %p29 = pneg %p23
      %p30 = scmp.eq.s32.totalorder %s14, 1
      %p31 = por %p29, %p30
      %p32 = scmp.ne.s32.totalorder %s24, %s27
      %p33 = scmp.eq.s32.totalorder %s14, 0
      %p34 = por %p32, %p33
      %p35 = scmp.ne.s32.totalorder %s24, %s27
      %p36 = scmp.eq.s32.totalorder %s19, 1
      %p37 = por %p35, %p36
      %p38 = scmp.ne.s32.totalorder %s27, %s28
      %p39 = scmp.eq.s32.totalorder %s19, 0
      %p40 = por %p38, %p39
      %p41 = scmp.ne.s32.totalorder %s27, %s28
      %p42 = scmp.eq.s32.totalorder %s20, 1
      %p43 = por %p41, %p42
      %p45 = scmp.ne.s32.totalorder %s28, %s44
      %p46 = scmp.eq.s32.totalorder %s20, 0
      %p47 = por %p45, %p46
      %s49 = sadd.s32 %s48, 1
      %p52 = scmp.eq.s32.totalorder %s14, 1
      %p53 = scmp.ne.s32.totalorder %s48, %s50
      %p54 = scmp.eq.s32.totalorder %s14, 0
      %p55 = por %p53, %p54
      %p56 = scmp.ne.s32.totalorder %s48, %s50
      %p57 = scmp.eq.s32.totalorder %s19, 1
      %p58 = por %p56, %p57
      %p59 = scmp.ne.s32.totalorder %s50, %s51
      %p60 = scmp.eq.s32.totalorder %s19, 0
      %p61 = por %p59, %p60
      %p62 = scmp.ne.s32.totalorder %s50, %s51
      %p63 = scmp.eq.s32.totalorder %s20, 1
      %p64 = por %p62, %p63
      %p66 = scmp.ne.s32.totalorder %s51, %s65
      %p67 = scmp.eq.s32.totalorder %s20, 0
      %p68 = por %p66, %p67
      %s70 = sadd.s32 %s69, 1
      %p73 = scmp.eq.s32.totalorder %s14, 1
      %p74 = scmp.ne.s32.totalorder %s69, %s71
      %p75 = scmp.eq.s32.totalorder %s14, 0
      %p76 = por %p74, %p75
      %p77 = scmp.ne.s32.totalorder %s69, %s71
      %p78 = scmp.eq.s32.totalorder %s19, 1
      %p79 = por %p77, %p78
      %p80 = scmp.ne.s32.totalorder %s71, %s72
      %p81 = scmp.eq.s32.totalorder %s19, 0
      %p82 = por %p80, %p81
      %p83 = scmp.ne.s32.totalorder %s71, %s72
      %p84 = scmp.eq.s32.totalorder %s20, 1
      %p85 = por %p83, %p84
      %p87 = scmp.ne.s32.totalorder %s72, %s86
      %p88 = scmp.eq.s32.totalorder %s20, 0
      %p89 = por %p87, %p88
      %s91 = sadd.s32 %s90, 1
      %p94 = scmp.eq.s32.totalorder %s14, 1
      %p95 = scmp.ne.s32.totalorder %s90, %s92
      %p96 = scmp.eq.s32.totalorder %s14, 0
      %p97 = por %p95, %p96
      %p98 = scmp.ne.s32.totalorder %s90, %s92
      %p99 = scmp.eq.s32.totalorder %s19, 1
      %p100 = por %p98, %p99
      %p101 = scmp.ne.s32.totalorder %s92, %s93
      %p102 = scmp.eq.s32.totalorder %s19, 0
      %p103 = por %p101, %p102
      %p104 = scmp.ne.s32.totalorder %s92, %s93
      %p105 = scmp.eq.s32.totalorder %s20, 1
      %p106 = por %p104, %p105
      %p108 = scmp.ne.s32.totalorder %s93, %s107
      %p109 = scmp.eq.s32.totalorder %s20, 0
      %p110 = por %p108, %p109
      %s112 = sadd.s32 %s111, 1
      %p115 = scmp.eq.s32.totalorder %s14, 1
      %p116 = scmp.ne.s32.totalorder %s111, %s113
      %p117 = scmp.eq.s32.totalorder %s14, 0
      %p118 = por %p116, %p117
      %p119 = scmp.ne.s32.totalorder %s111, %s113
      %p120 = scmp.eq.s32.totalorder %s19, 1
      %p121 = por %p119, %p120
      %p122 = scmp.ne.s32.totalorder %s113, %s114
      %p123 = scmp.eq.s32.totalorder %s19, 0
      %p124 = por %p122, %p123
      %p125 = scmp.ne.s32.totalorder %s113, %s114
      %p126 = scmp.eq.s32.totalorder %s20, 1
      %p127 = por %p125, %p126
      %p129 = scmp.ne.s32.totalorder %s114, %s128
      %p130 = scmp.eq.s32.totalorder %s20, 0
      %p131 = por %p129, %p130
      %s132 = ssub.s32 %s14, %s21
      %p133 = scmp.eq.s32.totalorder %s132, 0
      %s135 = sadd.s32 %s134, 1
      %s136 = scalar_select %p133, %s134, %s135
      %p139 = pneg %p133
      %p140 = scmp.eq.s32.totalorder %s14, 1
      %p141 = por %p139, %p140
      %p142 = scmp.ne.s32.totalorder %s134, %s137
      %p143 = scmp.eq.s32.totalorder %s14, 0
      %p144 = por %p142, %p143
      %p145 = scmp.ne.s32.totalorder %s134, %s137
      %p146 = scmp.eq.s32.totalorder %s19, 1
      %p147 = por %p145, %p146
      %p148 = scmp.ne.s32.totalorder %s137, %s138
      %p149 = scmp.eq.s32.totalorder %s19, 0
      %p150 = por %p148, %p149
      %p151 = scmp.ne.s32.totalorder %s137, %s138
      %p152 = scmp.eq.s32.totalorder %s20, 1
      %p153 = por %p151, %p152
      %p155 = scmp.ne.s32.totalorder %s138, %s154
      %p156 = scmp.eq.s32.totalorder %s20, 0
      %p157 = por %p155, %p156
      %p158 = scmp.le.s32.totalorder 1, %s14
      %p159 = scmp.lt.s32.totalorder %s14, 3
      %p160 = pnand %p158, %p159
      %p161 = pneg %p160
      // Predicated region
      $region9: #{tpu_custom_call.1} parent=5 // pred_check
        _
      $region10: #{tpu_custom_call.1} parent=5 // pred_check_branch
        %163 = sbr.rel (%p160) target = $region12
      $region11: #{tpu_custom_call.1} parent=5 // pred_region
        %s164 = ssub.s32 %s14, 1
        // Predicated region
        $region13: #{tpu_custom_call.1} parent=11 // pred_check
          %p165 = pneg %p61
        $region14: #{tpu_custom_call.1} parent=11 // pred_check_branch
          %167 = sbr.rel (%p165) target = $region16
        $region15: #{tpu_custom_call.1} parent=11 // pred_region
          _
        $region16: #{tpu_custom_call.1} parent=11 // pred_fallthru
          _
        // Predicated region
        $region17: #{tpu_custom_call.1} parent=11 // pred_check
          %p168 = pneg %p82
        $region18: #{tpu_custom_call.1} parent=11 // pred_check_branch
          %170 = sbr.rel (%p168) target = $region20
        $region19: #{tpu_custom_call.1} parent=11 // pred_region
          _
        $region20: #{tpu_custom_call.1} parent=11 // pred_fallthru
          _
        // Predicated region
        $region21: #{tpu_custom_call.1} parent=11 // pred_check
          %p171 = pneg %p103
        $region22: #{tpu_custom_call.1} parent=11 // pred_check_branch
          %173 = sbr.rel (%p171) target = $region24
        $region23: #{tpu_custom_call.1} parent=11 // pred_region
          _
        $region24: #{tpu_custom_call.1} parent=11 // pred_fallthru
          _
        // Predicated region
        $region25: #{tpu_custom_call.1} parent=11 // pred_check
          %p174 = pneg %p124
        $region26: #{tpu_custom_call.1} parent=11 // pred_check_branch
          %176 = sbr.rel (%p174) target = $region28
        $region27: #{tpu_custom_call.1} parent=11 // pred_region
          _
        $region28: #{tpu_custom_call.1} parent=11 // pred_fallthru
          _
      $region12: #{tpu_custom_call.1} parent=5 // pred_fallthru
        _
      %p177 = scmp.lt.s32.totalorder %s14, 2
      // Predicated region
      $region29: #{tpu_custom_call.1} parent=5 // pred_check
        %p178 = pneg %p177
      $region30: #{tpu_custom_call.1} parent=5 // pred_check_branch
        %180 = sbr.rel (%p178) target = $region32
      $region31: #{tpu_custom_call.1} parent=5 // pred_region
        // Predicated region
        $region33: #{tpu_custom_call.1} parent=31 // pred_check
          %p181 = pneg %p34
        $region34: #{tpu_custom_call.1} parent=31 // pred_check_branch
          %183 = sbr.rel (%p181) target = $region36
        $region35: #{tpu_custom_call.1} parent=31 // pred_region
          %s184 = smul.u32 3, %s14
          %s185 = ssub.s32 5, %s184
          %p186 = scmp.lt.s32.totalorder %s185, 3
          %s187 = scalar_select %p186, %s185, 3
          %s188 = smul.u32 128, %s187
          %s189 = smul.u32 %s188, 7
          %p190 = scmp.lt.s32.totalorder %s184, 4
          %s191 = scalar_select %p190, %s184, 4
          %s192 = smul.addr %s191, 7
          %s193 = smul.addr %s192, 8
          %s194 = scalar_lea.vmem %s0, %s193
          %s195 = smul.u32 3, %s14
          %s196 = ssub.s32 5, %s195
          %p197 = scmp.lt.s32.totalorder %s196, 3
          %s198 = scalar_select %p197, %s196, 3
          %s199 = smul.u32 128, %s198
          %s200 = smul.u32 %s199, 7
        $region36: #{tpu_custom_call.1} parent=31 // pred_fallthru
          _
      $region32: #{tpu_custom_call.1} parent=5 // pred_fallthru
        _
      %p201 = scmp.le.s32.totalorder 1, %s14
      %p202 = scmp.lt.s32.totalorder %s14, 3
      %p203 = pnand %p201, %p202
      %p204 = pneg %p203
      // Predicated region
      $region37: #{tpu_custom_call.1} parent=5 // pred_check
        _
      $region38: #{tpu_custom_call.1} parent=5 // pred_check_branch
        %206 = sbr.rel (%p203) target = $region40
      $region39: #{tpu_custom_call.1} parent=5 // pred_region
        %s207 = ssub.s32 %s14, 1
        %s208 = smul.u32 3, %s19
        %s209 = ssub.s32 5, %s208
        %p210 = scmp.lt.s32.totalorder %s209, 3
        %s211 = scalar_select %p210, %s209, 3
        %s212 = smul.u32 128, %s211
        %s213 = smul.u32 %s212, 7
        %p214 = scmp.lt.s32.totalorder %s208, 4
        %s215 = scalar_select %p214, %s208, 4
        %s216 = smul.addr %s215, 7
        %s217 = smul.addr %s216, 8
        %s218 = scalar_lea.vmem %s0, %s217
        %p219 = pneg %p40
        %p220 = pneg %p37
        %p221 = pneg %p61
        %p222 = pneg %p58
        %p223 = pneg %p82
        %p224 = pneg %p79
        %p225 = pneg %p103
        %p226 = pneg %p100
        %p227 = pneg %p124
        %p228 = pneg %p121
        %p229 = pneg %p150
        %p230 = pneg %p147
        %s231 = sand.u32 %s137, 1
        %s232 = scalar_lea.sflag [#allocation3], %s231
        %s233 = sand.u32 %s137, 1
        %s234 = smul.addr %s233, 168
        %s235 = scalar_lea.vmem [#allocation2], %s234
        %s236 = smul.u32 3, %s19
        %s237 = ssub.s32 5, %s236
        %p238 = scmp.lt.s32.totalorder %s237, 3
        %s239 = scalar_select %p238, %s237, 3
        %s240 = smul.u32 128, %s239
        %s241 = smul.u32 %s240, 7
        %p242 = scmp.lt.s32.totalorder %s236, 4
        %s243 = scalar_select %p242, %s236, 4
        %s244 = smul.addr %s243, 7
        %s245 = smul.addr %s244, 8
        %s246 = scalar_lea.vmem %s0, %s245
        %s247 = smul.u32 3, %s19
        %s248 = ssub.s32 5, %s247
        %p249 = scmp.lt.s32.totalorder %s248, 3
        %s250 = scalar_select %p249, %s248, 3
        %s251 = smul.u32 128, %s250
        %s252 = smul.u32 %s251, 7
        %s253 = smul.u32 3, %s19
        %s254 = ssub.s32 5, %s253
        %p255 = scmp.lt.s32.totalorder %s254, 3
        %s256 = scalar_select %p255, %s254, 3
        %s257 = smul.u32 128, %s256
        %s258 = smul.u32 %s257, 7
        %v259 = vld [vmem:[%s246] sm:$0xff]
        %v260 = vld [vmem:[%s246 + $0x8] sm:$0xff]
        %v261 = vld [vmem:[%s246 + $0x10] sm:$0xff]
        %v262 = vld [vmem:[%s246 + $0x18] sm:$0xff]
        %v263 = vld [vmem:[%s246 + $0x20] sm:$0xff]
        %v264 = vld [vmem:[%s246 + $0x28] sm:$0xff]
        %v265 = vld [vmem:[%s246 + $0x30] sm:$0xff]
        %v266 = vld [vmem:[%s246 + $0x38] sm:$0xff]
        %v267 = vld [vmem:[%s246 + $0x40] sm:$0xff]
        %v268 = vld [vmem:[%s246 + $0x48] sm:$0xff]
        %v269 = vld [vmem:[%s246 + $0x50] sm:$0xff]
        %v270 = vld [vmem:[%s246 + $0x58] sm:$0xff]
        %v271 = vld [vmem:[%s246 + $0x60] sm:$0xff]
        %v272 = vld [vmem:[%s246 + $0x68] sm:$0xff]
        %v273 = vld [vmem:[%s246 + $0x70] sm:$0xff]
        %v274 = vld [vmem:[%s246 + $0x78] sm:$0xff]
        %v275 = vld [vmem:[%s246 + $0x80] sm:$0xff]
        %v276 = vld [vmem:[%s246 + $0x88] sm:$0xff]
        %v277 = vld [vmem:[%s246 + $0x90] sm:$0xff]
        %v278 = vld [vmem:[%s246 + $0x98] sm:$0xff]
        %v279 = vld [vmem:[%s246 + $0xa0] sm:$0xff]
        %v280 = vld [vmem:[%s1] sm:$0xff]
        %v281 = vld [vmem:[%s1 + $0x8] sm:$0xff]
        %v282 = vld [vmem:[%s1 + $0x10] sm:$0xff]
        %v283 = vld [vmem:[%s1 + $0x18] sm:$0xff]
        %v284 = vld [vmem:[%s1 + $0x20] sm:$0xff]
        %v285 = vld [vmem:[%s1 + $0x28] sm:$0xff]
        %v286 = vld [vmem:[%s1 + $0x30] sm:$0xff]
        %v287 = vld [vmem:[%s1 + $0x38] sm:$0xff]
        %v288 = vld [vmem:[%s1 + $0x40] sm:$0xff]
        %v289 = vld [vmem:[%s1 + $0x48] sm:$0xff]
        %v290 = vld [vmem:[%s1 + $0x50] sm:$0xff]
        %v291 = vld [vmem:[%s1 + $0x58] sm:$0xff]
        %v292 = vld [vmem:[%s1 + $0x60] sm:$0xff]
        %v293 = vld [vmem:[%s1 + $0x68] sm:$0xff]
        %v294 = vld [vmem:[%s1 + $0x70] sm:$0xff]
        %v295 = vld [vmem:[%s1 + $0x78] sm:$0xff]
        %v296 = vld [vmem:[%s1 + $0x80] sm:$0xff]
        %v297 = vld [vmem:[%s1 + $0x88] sm:$0xff]
        %v298 = vld [vmem:[%s1 + $0x90] sm:$0xff]
        %v299 = vld [vmem:[%s1 + $0x98] sm:$0xff]
        %v300 = vld [vmem:[%s1 + $0xa0] sm:$0xff]
        %v301 = vld [vmem:[%s1 + $0xa8] sm:$0xff]
        %v302 = vld [vmem:[%s1 + $0xb0] sm:$0xff]
        %v303 = vld [vmem:[%s1 + $0xb8] sm:$0xff]
        %v304 = vld [vmem:[%s1 + $0xc0] sm:$0xff]
        %v305 = vld [vmem:[%s1 + $0xc8] sm:$0xff]
        %v306 = vld [vmem:[%s1 + $0xd0] sm:$0xff]
        %v307 = vld [vmem:[%s1 + $0xd8] sm:$0xff]
        %v308 = vld [vmem:[%s1 + $0xe0] sm:$0xff]
        %v309 = vld [vmem:[%s1 + $0xe8] sm:$0xff]
        %v310 = vld [vmem:[%s1 + $0xf0] sm:$0xff]
        %v311 = vld [vmem:[%s1 + $0xf8] sm:$0xff]
        %v312 = vld [vmem:[%s1 + $0x100] sm:$0xff]
        %v313 = vld [vmem:[%s1 + $0x108] sm:$0xff]
        %v314 = vld [vmem:[%s1 + $0x110] sm:$0xff]
        %v315 = vld [vmem:[%s1 + $0x118] sm:$0xff]
        %v316 = vld [vmem:[%s1 + $0x120] sm:$0xff]
        %v317 = vld [vmem:[%s1 + $0x128] sm:$0xff]
        %v318 = vld [vmem:[%s1 + $0x130] sm:$0xff]
        %v319 = vld [vmem:[%s1 + $0x138] sm:$0xff]
        %v320 = vld [vmem:[%s1 + $0x140] sm:$0xff]
        %v321 = vld [vmem:[%s1 + $0x148] sm:$0xff]
        %v322 = vld [vmem:[%s1 + $0x150] sm:$0xff]
        %v323 = vld [vmem:[%s1 + $0x158] sm:$0xff]
        %v324 = vld [vmem:[%s1 + $0x160] sm:$0xff]
        %v325 = vld [vmem:[%s1 + $0x168] sm:$0xff]
        %v326 = vld [vmem:[%s1 + $0x170] sm:$0xff]
        %v327 = vld [vmem:[%s1 + $0x178] sm:$0xff]
        %v328 = vld [vmem:[%s1 + $0x180] sm:$0xff]
        %v329 = vld [vmem:[%s1 + $0x188] sm:$0xff]
        %v330 = vld [vmem:[%s1 + $0x190] sm:$0xff]
        %v331 = vld [vmem:[%s1 + $0x198] sm:$0xff]
        %v332 = vld [vmem:[%s1 + $0x1a0] sm:$0xff]
        %v333 = vld [vmem:[%s1 + $0x1a8] sm:$0xff]
        %v334 = vld [vmem:[%s1 + $0x1b0] sm:$0xff]
        %v335 = vld [vmem:[%s1 + $0x1b8] sm:$0xff]
        %v336 = vld [vmem:[%s1 + $0x1c0] sm:$0xff]
        %v337 = vld [vmem:[%s1 + $0x1c8] sm:$0xff]
        %v338 = vld [vmem:[%s1 + $0x1d0] sm:$0xff]
        %v339 = vld [vmem:[%s1 + $0x1d8] sm:$0xff]
        %v340 = vld [vmem:[%s1 + $0x1e0] sm:$0xff]
        %v341 = vld [vmem:[%s1 + $0x1e8] sm:$0xff]
        %v342 = vld [vmem:[%s1 + $0x1f0] sm:$0xff]
        %v343 = vld [vmem:[%s1 + $0x1f8] sm:$0xff]
        %v344 = vld [vmem:[%s1 + $0x200] sm:$0xff]
        %v345 = vld [vmem:[%s1 + $0x208] sm:$0xff]
        %v346 = vld [vmem:[%s1 + $0x210] sm:$0xff]
        %v347 = vld [vmem:[%s1 + $0x218] sm:$0xff]
        %v348 = vld [vmem:[%s1 + $0x220] sm:$0xff]
        %v349 = vld [vmem:[%s1 + $0x228] sm:$0xff]
        %v350 = vld [vmem:[%s1 + $0x230] sm:$0xff]
        %v351 = vld [vmem:[%s1 + $0x238] sm:$0xff]
        %v352 = vld [vmem:[%s1 + $0x240] sm:$0xff]
        %v353 = vld [vmem:[%s1 + $0x248] sm:$0xff]
        %v354 = vld [vmem:[%s1 + $0x250] sm:$0xff]
        %v355 = vld [vmem:[%s1 + $0x258] sm:$0xff]
        %v356 = vld [vmem:[%s1 + $0x260] sm:$0xff]
        %v357 = vld [vmem:[%s1 + $0x268] sm:$0xff]
        %v358 = vld [vmem:[%s1 + $0x270] sm:$0xff]
        %v359 = vld [vmem:[%s1 + $0x278] sm:$0xff]
        %v360 = vld [vmem:[%s1 + $0x280] sm:$0xff]
        %v361 = vld [vmem:[%s1 + $0x288] sm:$0xff]
        %v362 = vld [vmem:[%s1 + $0x290] sm:$0xff]
        %v363 = vld [vmem:[%s1 + $0x298] sm:$0xff]
        %v364 = vld [vmem:[%s1 + $0x2a0] sm:$0xff]
        %v365 = vld [vmem:[%s1 + $0x2a8] sm:$0xff]
        %v366 = vld [vmem:[%s1 + $0x2b0] sm:$0xff]
        %v367 = vld [vmem:[%s1 + $0x2b8] sm:$0xff]
        %v368 = vld [vmem:[%s1 + $0x2c0] sm:$0xff]
        %v369 = vld [vmem:[%s1 + $0x2c8] sm:$0xff]
        %v370 = vld [vmem:[%s1 + $0x2d0] sm:$0xff]
        %v371 = vld [vmem:[%s1 + $0x2d8] sm:$0xff]
        %v372 = vld [vmem:[%s1 + $0x2e0] sm:$0xff]
        %v373 = vld [vmem:[%s1 + $0x2e8] sm:$0xff]
        %v374 = vld [vmem:[%s1 + $0x2f0] sm:$0xff]
        %v375 = vld [vmem:[%s1 + $0x2f8] sm:$0xff]
        %v376 = vld [vmem:[%s1 + $0x300] sm:$0xff]
        %v377 = vld [vmem:[%s1 + $0x308] sm:$0xff]
        %v378 = vld [vmem:[%s4] ss:$0 sm:$0xff]
        %vm379 = vcmask 130048
        %v381 = vsel %vm379, %v265, 0
        %v384 = vsel %vm379, %v272, 0
        %v387 = vsel %vm379, %v279, 0
        %389 = vmatprep.subr.mxu0 0.0
        %390 = vmatpush1.msra.mxu0 %v280
        %391 = vmatprep.subr.mxu0 0.0
        %392 = vmatpush1.msra.mxu0 %v281
        %393 = vmatprep.subr.mxu0 0.0
        %394 = vmatpush1.msra.mxu0 %v282
        %395 = vmatprep.subr.mxu0 0.0
        %396 = vmatpush1.msra.mxu0 %v283
        %397 = vmatprep.subr.mxu0 0.0
        %398 = vmatpush1.msra.mxu0 %v284
        %399 = vmatprep.subr.mxu0 0.0
        %400 = vmatpush1.msra.mxu0 %v285
        %401 = vmatprep.subr.mxu0 0.0
        %402 = vmatpush1.msra.mxu0 %v286
        %403 = vmatprep.subr.mxu0 0.0
        %404 = vmatpush1.msra.mxu0 %v287
        %405 = vmatprep.subr.mxu0 0.0
        %406 = vmatpush1.msra.mxu0 %v288
        %407 = vmatprep.subr.mxu0 0.0
        %408 = vmatpush1.msra.mxu0 %v289
        %409 = vmatprep.subr.mxu0 0.0
        %410 = vmatpush1.msra.mxu0 %v290
        %411 = vmatprep.subr.mxu0 0.0
        %412 = vmatpush1.msra.mxu0 %v291
        %413 = vmatprep.subr.mxu0 0.0
        %414 = vmatpush1.msra.mxu0 %v292
        %415 = vmatprep.subr.mxu0 0.0
        %416 = vmatpush1.msra.mxu0 %v293
        %417 = vmatprep.subr.mxu0 0.0
        %418 = vmatpush1.msra.mxu0 %v294
        %419 = vmatprep.subr.mxu0 0.0
        %420 = vmatpush1.msra.mxu0 %v295
        %421 = vmatprep.subr.mxu0 0.0
        %422 = vmatpush1.msra.mxu0 %v296
        %423 = vmatprep.subr.mxu0 0.0
        %424 = vmatpush1.msra.mxu0 %v297
        %425 = vmatprep.subr.mxu0 0.0
        %426 = vmatpush1.msra.mxu0 %v298
        %427 = vmatprep.subr.mxu0 0.0
        %428 = vmatpush1.msra.mxu0 %v299
        %429 = vmatprep.subr.mxu0 0.0
        %430 = vmatpush1.msra.mxu0 %v300
        %431 = vmatprep.subr.mxu0 0.0
        %432 = vmatpush1.msra.mxu0 %v301
        %433 = vmatprep.subr.mxu0 0.0
        %434 = vmatpush1.msra.mxu0 %v302
        %435 = vmatprep.subr.mxu0 0.0
        %436 = vmatpush1.msra.mxu0 %v303
        %437 = vmatprep.subr.mxu0 0.0
        %438 = vmatpush1.msra.mxu0 %v304
        %439 = vmatprep.subr.mxu0 0.0
        %440 = vmatpush1.msra.mxu0 %v305
        %441 = vmatprep.subr.mxu0 0.0
        %442 = vmatpush1.msra.mxu0 %v306
        %443 = vmatprep.subr.mxu0 0.0
        %444 = vmatpush1.msra.mxu0 %v307
        %445 = vmatprep.subr.mxu0 0.0
        %446 = vmatpush1.msra.mxu0 %v308
        %447 = vmatprep.subr.mxu0 0.0
        %448 = vmatpush1.msra.mxu0 %v309
        %449 = vmatprep.subr.mxu0 0.0
        %450 = vmatpush1.msra.mxu0 %v310
        %451 = vmatprep.subr.mxu0 0.0
        %452 = vmatpush1.msra.mxu0 %v311
        %453 = vmatprep.mubr.f32.mxu0 %v260
        %454 = vmatmul.mubr.f32.gmra.mrb[0].mxu0 %v259
        %v455 = vpop.f32.mrb[0].mxu0
        %v456 = vadd.f32 %v378, %v455
        %v457 = vpop.f32.mrb[0].mxu0
        %458 = vmatprep.mubr.f32.mxu0 %v267
        %459 = vmatmul.mubr.f32.gmra.mrb[0].mxu0 %v266
        %v460 = vpop.f32.mrb[0].mxu0
        %v461 = vadd.f32 %v378, %v460
        %v462 = vpop.f32.mrb[0].mxu0
        %463 = vmatprep.mubr.f32.mxu0 %v274
        %464 = vmatmul.mubr.f32.gmra.mrb[0].mxu0 %v273
        %v465 = vpop.f32.mrb[0].mxu0
        %v466 = vadd.f32 %v378, %v465
        %v467 = vpop.f32.mrb[0].mxu0
        %468 = vdwg.mxu0
        %469 = vmatprep.subr.mxu0 0.0
        %470 = vmatpush1.msra.mxu0 %v312
        %471 = vmatprep.subr.mxu0 0.0
        %472 = vmatpush1.msra.mxu0 %v313
        %473 = vmatprep.subr.mxu0 0.0
        %474 = vmatpush1.msra.mxu0 %v314
        %475 = vmatprep.subr.mxu0 0.0
        %476 = vmatpush1.msra.mxu0 %v315
        %477 = vmatprep.subr.mxu0 0.0
        %478 = vmatpush1.msra.mxu0 %v316
        %479 = vmatprep.subr.mxu0 0.0
        %480 = vmatpush1.msra.mxu0 %v317
        %481 = vmatprep.subr.mxu0 0.0
        %482 = vmatpush1.msra.mxu0 %v318
        %483 = vmatprep.subr.mxu0 0.0
        %484 = vmatpush1.msra.mxu0 %v319
        %485 = vmatprep.subr.mxu0 0.0
        %486 = vmatpush1.msra.mxu0 %v320
        %487 = vmatprep.subr.mxu0 0.0
        %488 = vmatpush1.msra.mxu0 %v321
        %489 = vmatprep.subr.mxu0 0.0
        %490 = vmatpush1.msra.mxu0 %v322
        %491 = vmatprep.subr.mxu0 0.0
        %492 = vmatpush1.msra.mxu0 %v323
        %493 = vmatprep.subr.mxu0 0.0
        %494 = vmatpush1.msra.mxu0 %v324
        %495 = vmatprep.subr.mxu0 0.0
        %496 = vmatpush1.msra.mxu0 %v325
        %497 = vmatprep.subr.mxu0 0.0
        %498 = vmatpush1.msra.mxu0 %v326
        %499 = vmatprep.subr.mxu0 0.0
        %500 = vmatpush1.msra.mxu0 %v327
        %501 = vmatprep.subr.mxu0 0.0
        %502 = vmatpush1.msra.mxu0 %v328
        %503 = vmatprep.subr.mxu0 0.0
        %504 = vmatpush1.msra.mxu0 %v329
        %505 = vmatprep.subr.mxu0 0.0
        %506 = vmatpush1.msra.mxu0 %v330
        %507 = vmatprep.subr.mxu0 0.0
        %508 = vmatpush1.msra.mxu0 %v331
        %509 = vmatprep.subr.mxu0 0.0
        %510 = vmatpush1.msra.mxu0 %v332
        %511 = vmatprep.subr.mxu0 0.0
        %512 = vmatpush1.msra.mxu0 %v333
        %513 = vmatprep.subr.mxu0 0.0
        %514 = vmatpush1.msra.mxu0 %v334
        %515 = vmatprep.subr.mxu0 0.0
        %516 = vmatpush1.msra.mxu0 %v335
        %517 = vmatprep.subr.mxu0 0.0
        %518 = vmatpush1.msra.mxu0 %v336
        %519 = vmatprep.subr.mxu0 0.0
        %520 = vmatpush1.msra.mxu0 %v337
        %521 = vmatprep.subr.mxu0 0.0
        %522 = vmatpush1.msra.mxu0 %v338
        %523 = vmatprep.subr.mxu0 0.0
        %524 = vmatpush1.msra.mxu0 %v339
        %525 = vmatprep.subr.mxu0 0.0
        %526 = vmatpush1.msra.mxu0 %v340
        %527 = vmatprep.subr.mxu0 0.0
        %528 = vmatpush1.msra.mxu0 %v341
        %529 = vmatprep.subr.mxu0 0.0
        %530 = vmatpush1.msra.mxu0 %v342
        %531 = vmatprep.subr.mxu0 0.0
        %532 = vmatpush1.msra.mxu0 %v343
        %533 = vmatprep.mubr.f32.mxu0 %v262
        %534 = vmatmul.mubr.f32.gmra.mrb[0].mxu0 %v261
        %v535 = vpop.f32.mrb[0].mxu0
        %v536 = vadd.f32 %v456, %v535
        %v537 = vpop.f32.mrb[0].mxu0
        %538 = vmatprep.mubr.f32.mxu0 %v269
        %539 = vmatmul.mubr.f32.gmra.mrb[0].mxu0 %v268
        %v540 = vpop.f32.mrb[0].mxu0
        %v541 = vadd.f32 %v461, %v540
        %v542 = vpop.f32.mrb[0].mxu0
        %543 = vmatprep.mubr.f32.mxu0 %v276
        %544 = vmatmul.mubr.f32.gmra.mrb[0].mxu0 %v275
        %v545 = vpop.f32.mrb[0].mxu0
        %v546 = vadd.f32 %v466, %v545
        %v547 = vpop.f32.mrb[0].mxu0
        %548 = vdwg.mxu0
        %549 = vmatprep.subr.mxu0 0.0
        %550 = vmatpush1.msra.mxu0 %v344
        %551 = vmatprep.subr.mxu0 0.0
        %552 = vmatpush1.msra.mxu0 %v345
        %553 = vmatprep.subr.mxu0 0.0
        %554 = vmatpush1.msra.mxu0 %v346
        %555 = vmatprep.subr.mxu0 0.0
        %556 = vmatpush1.msra.mxu0 %v347
        %557 = vmatprep.subr.mxu0 0.0
        %558 = vmatpush1.msra.mxu0 %v348
        %559 = vmatprep.subr.mxu0 0.0
        %560 = vmatpush1.msra.mxu0 %v349
        %561 = vmatprep.subr.mxu0 0.0
        %562 = vmatpush1.msra.mxu0 %v350
        %563 = vmatprep.subr.mxu0 0.0
        %564 = vmatpush1.msra.mxu0 %v351
        %565 = vmatprep.subr.mxu0 0.0
        %566 = vmatpush1.msra.mxu0 %v352
        %567 = vmatprep.subr.mxu0 0.0
        %568 = vmatpush1.msra.mxu0 %v353
        %569 = vmatprep.subr.mxu0 0.0
        %570 = vmatpush1.msra.mxu0 %v354
        %571 = vmatprep.subr.mxu0 0.0
        %572 = vmatpush1.msra.mxu0 %v355
        %573 = vmatprep.subr.mxu0 0.0
        %574 = vmatpush1.msra.mxu0 %v356
        %575 = vmatprep.subr.mxu0 0.0
        %576 = vmatpush1.msra.mxu0 %v357
        %577 = vmatprep.subr.mxu0 0.0
        %578 = vmatpush1.msra.mxu0 %v358
        %579 = vmatprep.subr.mxu0 0.0
        %580 = vmatpush1.msra.mxu0 %v359
        %581 = vmatprep.subr.mxu0 0.0
        %582 = vmatpush1.msra.mxu0 %v360
        %583 = vmatprep.subr.mxu0 0.0
        %584 = vmatpush1.msra.mxu0 %v361
        %585 = vmatprep.subr.mxu0 0.0
        %586 = vmatpush1.msra.mxu0 %v362
        %587 = vmatprep.subr.mxu0 0.0
        %588 = vmatpush1.msra.mxu0 %v363
        %589 = vmatprep.subr.mxu0 0.0
        %590 = vmatpush1.msra.mxu0 %v364
        %591 = vmatprep.subr.mxu0 0.0
        %592 = vmatpush1.msra.mxu0 %v365
        %593 = vmatprep.subr.mxu0 0.0
        %594 = vmatpush1.msra.mxu0 %v366
        %595 = vmatprep.subr.mxu0 0.0
        %596 = vmatpush1.msra.mxu0 %v367
        %597 = vmatprep.subr.mxu0 0.0
        %598 = vmatpush1.msra.mxu0 %v368
        %599 = vmatprep.subr.mxu0 0.0
        %600 = vmatpush1.msra.mxu0 %v369
        %601 = vmatprep.subr.mxu0 0.0
        %602 = vmatpush1.msra.mxu0 %v370
        %603 = vmatprep.subr.mxu0 0.0
        %604 = vmatpush1.msra.mxu0 %v371
        %605 = vmatprep.subr.mxu0 0.0
        %606 = vmatpush1.msra.mxu0 %v372
        %607 = vmatprep.subr.mxu0 0.0
        %608 = vmatpush1.msra.mxu0 %v373
        %609 = vmatprep.subr.mxu0 0.0
        %610 = vmatpush1.msra.mxu0 %v374
        %611 = vmatprep.subr.mxu0 0.0
        %612 = vmatpush1.msra.mxu0 %v375
        %613 = vmatprep.mubr.f32.mxu0 %v264
        %614 = vmatmul.mubr.f32.gmra.mrb[0].mxu0 %v263
        %v615 = vpop.f32.mrb[0].mxu0
        %v616 = vadd.f32 %v536, %v615
        %v617 = vpop.f32.mrb[0].mxu0
        %618 = vmatprep.mubr.f32.mxu0 %v271
        %619 = vmatmul.mubr.f32.gmra.mrb[0].mxu0 %v270
        %v620 = vpop.f32.mrb[0].mxu0
        %v621 = vadd.f32 %v541, %v620
        %v622 = vpop.f32.mrb[0].mxu0
        %623 = vmatprep.mubr.f32.mxu0 %v278
        %624 = vmatmul.mubr.f32.gmra.mrb[0].mxu0 %v277
        %v625 = vpop.f32.mrb[0].mxu0
        %v626 = vadd.f32 %v546, %v625
        %v627 = vpop.f32.mrb[0].mxu0
        %628 = vdwg.mxu0
        %629 = vmatprep.subr.mxu0 0.0
        %630 = vmatpush1.msra.mxu0 %v376
        %631 = vmatprep.subr.mxu0 0.0
        %632 = vmatpush1.msra.mxu0 %v377
        %633 = vmatprep.subr.mxu0 0.0
        %634 = vmatpush1.msra.mxu0 0.0
        %635 = vmatprep.subr.mxu0 0.0
        %636 = vmatpush1.msra.mxu0 0.0
        %637 = vmatprep.subr.mxu0 0.0
        %638 = vmatpush1.msra.mxu0 0.0
        %639 = vmatprep.subr.mxu0 0.0
        %640 = vmatpush1.msra.mxu0 0.0
        %641 = vmatprep.subr.mxu0 0.0
        %642 = vmatpush1.msra.mxu0 0.0
        %643 = vmatprep.subr.mxu0 0.0
        %644 = vmatpush1.msra.mxu0 0.0
        %645 = vmatprep.subr.mxu0 0.0
        %646 = vmatpush1.msra.mxu0 0.0
        %647 = vmatprep.subr.mxu0 0.0
        %648 = vmatpush1.msra.mxu0 0.0
        %649 = vmatprep.subr.mxu0 0.0
        %650 = vmatpush1.msra.mxu0 0.0
        %651 = vmatprep.subr.mxu0 0.0
        %652 = vmatpush1.msra.mxu0 0.0
        %653 = vmatprep.subr.mxu0 0.0
        %654 = vmatpush1.msra.mxu0 0.0
        %655 = vmatprep.subr.mxu0 0.0
        %656 = vmatpush1.msra.mxu0 0.0
        %657 = vmatprep.subr.mxu0 0.0
        %658 = vmatpush1.msra.mxu0 0.0
        %659 = vmatprep.subr.mxu0 0.0
        %660 = vmatpush1.msra.mxu0 0.0
        %661 = vmatprep.subr.mxu0 0.0
        %662 = vmatpush1.msra.mxu0 0.0
        %663 = vmatprep.subr.mxu0 0.0
        %664 = vmatpush1.msra.mxu0 0.0
        %665 = vmatprep.subr.mxu0 0.0
        %666 = vmatpush1.msra.mxu0 0.0
        %667 = vmatprep.subr.mxu0 0.0
        %668 = vmatpush1.msra.mxu0 0.0
        %669 = vmatprep.subr.mxu0 0.0
        %670 = vmatpush1.msra.mxu0 0.0
        %671 = vmatprep.subr.mxu0 0.0
        %672 = vmatpush1.msra.mxu0 0.0
        %673 = vmatprep.subr.mxu0 0.0
        %674 = vmatpush1.msra.mxu0 0.0
        %675 = vmatprep.subr.mxu0 0.0
        %676 = vmatpush1.msra.mxu0 0.0
        %677 = vmatprep.subr.mxu0 0.0
        %678 = vmatpush1.msra.mxu0 0.0
        %679 = vmatprep.subr.mxu0 0.0
        %680 = vmatpush1.msra.mxu0 0.0
        %681 = vmatprep.subr.mxu0 0.0
        %682 = vmatpush1.msra.mxu0 0.0
        %683 = vmatprep.subr.mxu0 0.0
        %684 = vmatpush1.msra.mxu0 0.0
        %685 = vmatprep.subr.mxu0 0.0
        %686 = vmatpush1.msra.mxu0 0.0
        %687 = vmatprep.subr.mxu0 0.0
        %688 = vmatpush1.msra.mxu0 0.0
        %689 = vmatprep.subr.mxu0 0.0
        %690 = vmatpush1.msra.mxu0 0.0
        %691 = vmatprep.subr.mxu0 0.0
        %692 = vmatpush1.msra.mxu0 0.0
        %693 = vmatprep.mubr.f32.mxu0 0.0
        %694 = vmatmul.mubr.f32.gmra.mrb[0].mxu0 %v381
        %v695 = vpop.f32.mrb[0].mxu0
        %v696 = vadd.f32 %v616, %v695
        %v697 = vpop.f32.mrb[0].mxu0
        %698 = vmatprep.mubr.f32.mxu0 0.0
        %699 = vmatmul.mubr.f32.gmra.mrb[0].mxu0 %v384
        %v700 = vpop.f32.mrb[0].mxu0
        %v701 = vadd.f32 %v621, %v700
        %v702 = vpop.f32.mrb[0].mxu0
        %703 = vmatprep.mubr.f32.mxu0 0.0
        %704 = vmatmul.mubr.f32.gmra.mrb[0].mxu0 %v387
        %v705 = vpop.f32.mrb[0].mxu0
        %v706 = vadd.f32 %v626, %v705
        %v707 = vpop.f32.mrb[0].mxu0
        %708 = vdwg.mxu0
        %v709 = vmax.f32 %v696, 0.0
        %v710 = vmax.f32 %v701, 0.0
        %v711 = vmax.f32 %v706, 0.0
        %v712 = vld [vmem:[%s3] sm:$0xff]
        %v713 = vld [vmem:[%s3 + $0x8] sm:$0xff]
        %v714 = vld [vmem:[%s3 + $0x10] sm:$0xff]
        %v715 = vld [vmem:[%s3 + $0x18] sm:$0xff]
        %v716 = vld [vmem:[%s3 + $0x20] sm:$0xff]
        %v717 = vld [vmem:[%s3 + $0x28] sm:$0xff]
        %v718 = vld [vmem:[%s3 + $0x30] sm:$0xff]
        %v719 = vld [vmem:[%s3 + $0x38] sm:$0xff]
        %v720 = vld [vmem:[%s3 + $0x40] sm:$0xff]
        %v721 = vld [vmem:[%s3 + $0x48] sm:$0xff]
        %v722 = vld [vmem:[%s3 + $0x50] sm:$0xff]
        %v723 = vld [vmem:[%s3 + $0x58] sm:$0xff]
        %v724 = vld [vmem:[%s3 + $0x60] sm:$0xff]
        %v725 = vld [vmem:[%s3 + $0x68] sm:$0xff]
        %v726 = vld [vmem:[%s3 + $0x70] sm:$0xff]
        %v727 = vld [vmem:[%s3 + $0x78] sm:$0xff]
        %v728 = vld [vmem:[%s4 + $0x1] ss:$0 sm:$0xff]
        %729 = vmatprep.subr.mxu0 0.0
        %730 = vmatpush1.msra.mxu0 %v712
        %731 = vmatprep.subr.mxu0 0.0
        %732 = vmatpush1.msra.mxu0 %v713
        %733 = vmatprep.subr.mxu0 0.0
        %734 = vmatpush1.msra.mxu0 %v714
        %735 = vmatprep.subr.mxu0 0.0
        %736 = vmatpush1.msra.mxu0 %v715
        %737 = vmatprep.subr.mxu0 0.0
        %738 = vmatpush1.msra.mxu0 %v716
        %739 = vmatprep.subr.mxu0 0.0
        %740 = vmatpush1.msra.mxu0 %v717
        %741 = vmatprep.subr.mxu0 0.0
        %742 = vmatpush1.msra.mxu0 %v718
        %743 = vmatprep.subr.mxu0 0.0
        %744 = vmatpush1.msra.mxu0 %v719
        %745 = vmatprep.subr.mxu0 0.0
        %746 = vmatpush1.msra.mxu0 %v720
        %747 = vmatprep.subr.mxu0 0.0
        %748 = vmatpush1.msra.mxu0 %v721
        %749 = vmatprep.subr.mxu0 0.0
        %750 = vmatpush1.msra.mxu0 %v722
        %751 = vmatprep.subr.mxu0 0.0
        %752 = vmatpush1.msra.mxu0 %v723
        %753 = vmatprep.subr.mxu0 0.0
        %754 = vmatpush1.msra.mxu0 %v724
        %755 = vmatprep.subr.mxu0 0.0
        %756 = vmatpush1.msra.mxu0 %v725
        %757 = vmatprep.subr.mxu0 0.0
        %758 = vmatpush1.msra.mxu0 %v726
        %759 = vmatprep.subr.mxu0 0.0
        %760 = vmatpush1.msra.mxu0 %v727
        %761 = vmatprep.subr.mxu0 0.0
        %762 = vmatpush1.msra.mxu0 0.0
        %763 = vmatprep.subr.mxu0 0.0
        %764 = vmatpush1.msra.mxu0 0.0
        %765 = vmatprep.subr.mxu0 0.0
        %766 = vmatpush1.msra.mxu0 0.0
        %767 = vmatprep.subr.mxu0 0.0
        %768 = vmatpush1.msra.mxu0 0.0
        %769 = vmatprep.subr.mxu0 0.0
        %770 = vmatpush1.msra.mxu0 0.0
        %771 = vmatprep.subr.mxu0 0.0
        %772 = vmatpush1.msra.mxu0 0.0
        %773 = vmatprep.subr.mxu0 0.0
        %774 = vmatpush1.msra.mxu0 0.0
        %775 = vmatprep.subr.mxu0 0.0
        %776 = vmatpush1.msra.mxu0 0.0
        %777 = vmatprep.subr.mxu0 0.0
        %778 = vmatpush1.msra.mxu0 0.0
        %779 = vmatprep.subr.mxu0 0.0
        %780 = vmatpush1.msra.mxu0 0.0
        %781 = vmatprep.subr.mxu0 0.0
        %782 = vmatpush1.msra.mxu0 0.0
        %783 = vmatprep.subr.mxu0 0.0
        %784 = vmatpush1.msra.mxu0 0.0
        %785 = vmatprep.subr.mxu0 0.0
        %786 = vmatpush1.msra.mxu0 0.0
        %787 = vmatprep.subr.mxu0 0.0
        %788 = vmatpush1.msra.mxu0 0.0
        %789 = vmatprep.subr.mxu0 0.0
        %790 = vmatpush1.msra.mxu0 0.0
        %791 = vmatprep.subr.mxu0 0.0
        %792 = vmatpush1.msra.mxu0 0.0
        %793 = vmatprep.mubr.f32.mxu0 0.0
        %794 = vmatmul.mubr.f32.gmra.mrb[0].mxu0 %v709
        %v795 = vpop.f32.mrb[0].mxu0
        %v796 = vadd.f32 %v728, %v795
        %v797 = vpop.f32.mrb[0].mxu0
        %798 = vmatprep.mubr.f32.mxu0 0.0
        %799 = vmatmul.mubr.f32.gmra.mrb[0].mxu0 %v710
        %v800 = vpop.f32.mrb[0].mxu0
        %v801 = vadd.f32 %v728, %v800
        %v802 = vpop.f32.mrb[0].mxu0
        %803 = vmatprep.mubr.f32.mxu0 0.0
        %804 = vmatmul.mubr.f32.gmra.mrb[0].mxu0 %v711
        %v805 = vpop.f32.mrb[0].mxu0
        %v806 = vadd.f32 %v728, %v805
        %v807 = vpop.f32.mrb[0].mxu0
        %808 = vdwg.mxu0
        %v809 = vmax.f32 %v796, 0.0
        %v810 = vmax.f32 %v801, 0.0
        %v811 = vmax.f32 %v806, 0.0
        %v812 = vld [vmem:[%s3 + $0x80] sm:$0xff]
        %v813 = vld [vmem:[%s3 + $0x88] sm:$0xff]
        %v814 = vld [vmem:[%s3 + $0x90] sm:$0xff]
        %v815 = vld [vmem:[%s3 + $0x98] sm:$0xff]
        %v816 = vld [vmem:[%s3 + $0xa0] sm:$0xff]
        %v817 = vld [vmem:[%s3 + $0xa8] sm:$0xff]
        %v818 = vld [vmem:[%s3 + $0xb0] sm:$0xff]
        %v819 = vld [vmem:[%s3 + $0xb8] sm:$0xff]
        %v820 = vld [vmem:[%s4 + $0x2] ss:$0 sm:$0xff]
        %vm821 = vcmask 523264
        %v823 = vsel %vm821, %v809, 0
        %v826 = vsel %vm821, %v810, 0
        %v829 = vsel %vm821, %v811, 0
        %831 = vmatprep.subr.mxu0 0.0
        %832 = vmatpush1.msra.mxu0 %v812
        %833 = vmatprep.subr.mxu0 0.0
        %834 = vmatpush1.msra.mxu0 %v813
        %835 = vmatprep.subr.mxu0 0.0
        %836 = vmatpush1.msra.mxu0 %v814
        %837 = vmatprep.subr.mxu0 0.0
        %838 = vmatpush1.msra.mxu0 %v815
        %839 = vmatprep.subr.mxu0 0.0
        %840 = vmatpush1.msra.mxu0 %v816
        %841 = vmatprep.subr.mxu0 0.0
        %842 = vmatpush1.msra.mxu0 %v817
        %843 = vmatprep.subr.mxu0 0.0
        %844 = vmatpush1.msra.mxu0 %v818
        %845 = vmatprep.subr.mxu0 0.0
        %846 = vmatpush1.msra.mxu0 %v819
        %847 = vmatprep.subr.mxu0 0.0
        %848 = vmatpush1.msra.mxu0 0.0
        %849 = vmatprep.subr.mxu0 0.0
        %850 = vmatpush1.msra.mxu0 0.0
        %851 = vmatprep.subr.mxu0 0.0
        %852 = vmatpush1.msra.mxu0 0.0
        %853 = vmatprep.subr.mxu0 0.0
        %854 = vmatpush1.msra.mxu0 0.0
        %855 = vmatprep.subr.mxu0 0.0
        %856 = vmatpush1.msra.mxu0 0.0
        %857 = vmatprep.subr.mxu0 0.0
        %858 = vmatpush1.msra.mxu0 0.0
        %859 = vmatprep.subr.mxu0 0.0
        %860 = vmatpush1.msra.mxu0 0.0
        %861 = vmatprep.subr.mxu0 0.0
        %862 = vmatpush1.msra.mxu0 0.0
        %863 = vmatprep.subr.mxu0 0.0
        %864 = vmatpush1.msra.mxu0 0.0
        %865 = vmatprep.subr.mxu0 0.0
        %866 = vmatpush1.msra.mxu0 0.0
        %867 = vmatprep.subr.mxu0 0.0
        %868 = vmatpush1.msra.mxu0 0.0
        %869 = vmatprep.subr.mxu0 0.0
        %870 = vmatpush1.msra.mxu0 0.0
        %871 = vmatprep.subr.mxu0 0.0
        %872 = vmatpush1.msra.mxu0 0.0
        %873 = vmatprep.subr.mxu0 0.0
        %874 = vmatpush1.msra.mxu0 0.0
        %875 = vmatprep.subr.mxu0 0.0
        %876 = vmatpush1.msra.mxu0 0.0
        %877 = vmatprep.subr.mxu0 0.0
        %878 = vmatpush1.msra.mxu0 0.0
        %879 = vmatprep.subr.mxu0 0.0
        %880 = vmatpush1.msra.mxu0 0.0
        %881 = vmatprep.subr.mxu0 0.0
        %882 = vmatpush1.msra.mxu0 0.0
        %883 = vmatprep.subr.mxu0 0.0
        %884 = vmatpush1.msra.mxu0 0.0
        %885 = vmatprep.subr.mxu0 0.0
        %886 = vmatpush1.msra.mxu0 0.0
        %887 = vmatprep.subr.mxu0 0.0
        %888 = vmatpush1.msra.mxu0 0.0
        %889 = vmatprep.subr.mxu0 0.0
        %890 = vmatpush1.msra.mxu0 0.0
        %891 = vmatprep.subr.mxu0 0.0
        %892 = vmatpush1.msra.mxu0 0.0
        %893 = vmatprep.subr.mxu0 0.0
        %894 = vmatpush1.msra.mxu0 0.0
        %895 = vmatprep.mubr.f32.mxu0 0.0
        %896 = vmatmul.mubr.f32.gmra.mrb[0].mxu0 %v823
        %v897 = vpop.f32.mrb[0].mxu0
        %v898 = vadd.f32 %v820, %v897
        %v899 = vpop.f32.mrb[0].mxu0
        %900 = vmatprep.mubr.f32.mxu0 0.0
        %901 = vmatmul.mubr.f32.gmra.mrb[0].mxu0 %v826
        %v902 = vpop.f32.mrb[0].mxu0
        %v903 = vadd.f32 %v820, %v902
        %v904 = vpop.f32.mrb[0].mxu0
        %905 = vmatprep.mubr.f32.mxu0 0.0
        %906 = vmatmul.mubr.f32.gmra.mrb[0].mxu0 %v829
        %v907 = vpop.f32.mrb[0].mxu0
        %v908 = vadd.f32 %v820, %v907
        %v909 = vpop.f32.mrb[0].mxu0
        %910 = vdwg.mxu0
        %v911 = vmax.f32 %v898, 0.0
        %v912 = vmax.f32 %v903, 0.0
        %v913 = vmax.f32 %v908, 0.0
        %v914 = vld [vmem:[%s3 + $0xc0] sm:$0xff]
        %v915 = vld [vmem:[%s3 + $0xc8] sm:$0xf]
        %v916 = vld [vmem:[%s4 + $0x3] ss:$0 sm:$0xff]
        %vm917 = vcmask 97280
        %v919 = vsel %vm917, %v911, 0
        %v922 = vsel %vm917, %v912, 0
        %v925 = vsel %vm917, %v913, 0
        %vm927 = vcmask 1043456
        %v929 = vsel %vm927, %v915, 0
        %931 = vmatprep.subr.mxu0 0.0
        %932 = vmatpush1.msra.mxu0 %v914
        %933 = vmatprep.subr.mxu0 0.0
        %934 = vmatpush1.msra.mxu0 %v929
        %935 = vmatprep.subr.mxu0 0.0
        %936 = vmatpush1.msra.mxu0 0.0
        %937 = vmatprep.subr.mxu0 0.0
        %938 = vmatpush1.msra.mxu0 0.0
        %939 = vmatprep.subr.mxu0 0.0
        %940 = vmatpush1.msra.mxu0 0.0
        %941 = vmatprep.subr.mxu0 0.0
        %942 = vmatpush1.msra.mxu0 0.0
        %943 = vmatprep.subr.mxu0 0.0
        %944 = vmatpush1.msra.mxu0 0.0
        %945 = vmatprep.subr.mxu0 0.0
        %946 = vmatpush1.msra.mxu0 0.0
        %947 = vmatprep.subr.mxu0 0.0
        %948 = vmatpush1.msra.mxu0 0.0
        %949 = vmatprep.subr.mxu0 0.0
        %950 = vmatpush1.msra.mxu0 0.0
        %951 = vmatprep.subr.mxu0 0.0
        %952 = vmatpush1.msra.mxu0 0.0
        %953 = vmatprep.subr.mxu0 0.0
        %954 = vmatpush1.msra.mxu0 0.0
        %955 = vmatprep.subr.mxu0 0.0
        %956 = vmatpush1.msra.mxu0 0.0
        %957 = vmatprep.subr.mxu0 0.0
        %958 = vmatpush1.msra.mxu0 0.0
        %959 = vmatprep.subr.mxu0 0.0
        %960 = vmatpush1.msra.mxu0 0.0
        %961 = vmatprep.subr.mxu0 0.0
        %962 = vmatpush1.msra.mxu0 0.0
        %963 = vmatprep.subr.mxu0 0.0
        %964 = vmatpush1.msra.mxu0 0.0
        %965 = vmatprep.subr.mxu0 0.0
        %966 = vmatpush1.msra.mxu0 0.0
        %967 = vmatprep.subr.mxu0 0.0
        %968 = vmatpush1.msra.mxu0 0.0
        %969 = vmatprep.subr.mxu0 0.0
        %970 = vmatpush1.msra.mxu0 0.0
        %971 = vmatprep.subr.mxu0 0.0
        %972 = vmatpush1.msra.mxu0 0.0
        %973 = vmatprep.subr.mxu0 0.0
        %974 = vmatpush1.msra.mxu0 0.0
        %975 = vmatprep.subr.mxu0 0.0
        %976 = vmatpush1.msra.mxu0 0.0
        %977 = vmatprep.subr.mxu0 0.0
        %978 = vmatpush1.msra.mxu0 0.0
        %979 = vmatprep.subr.mxu0 0.0
        %980 = vmatpush1.msra.mxu0 0.0
        %981 = vmatprep.subr.mxu0 0.0
        %982 = vmatpush1.msra.mxu0 0.0
        %983 = vmatprep.subr.mxu0 0.0
        %984 = vmatpush1.msra.mxu0 0.0
        %985 = vmatprep.subr.mxu0 0.0
        %986 = vmatpush1.msra.mxu0 0.0
        %987 = vmatprep.subr.mxu0 0.0
        %988 = vmatpush1.msra.mxu0 0.0
        %989 = vmatprep.subr.mxu0 0.0
        %990 = vmatpush1.msra.mxu0 0.0
        %991 = vmatprep.subr.mxu0 0.0
        %992 = vmatpush1.msra.mxu0 0.0
        %993 = vmatprep.subr.mxu0 0.0
        %994 = vmatpush1.msra.mxu0 0.0
        %995 = vmatprep.mubr.f32.mxu0 0.0
        %996 = vmatmul.mubr.f32.gmra.mrb[0].mxu0 %v919
        %v997 = vpop.f32.mrb[0].mxu0
        %v998 = vadd.f32 %v916, %v997
        %v999 = vpop.f32.mrb[0].mxu0
        %1000 = vmatprep.mubr.f32.mxu0 0.0
        %1001 = vmatmul.mubr.f32.gmra.mrb[0].mxu0 %v922
        %v1002 = vpop.f32.mrb[0].mxu0
        %v1003 = vadd.f32 %v916, %v1002
        %v1004 = vpop.f32.mrb[0].mxu0
        %1005 = vmatprep.mubr.f32.mxu0 0.0
        %1006 = vmatmul.mubr.f32.gmra.mrb[0].mxu0 %v925
        %v1007 = vpop.f32.mrb[0].mxu0
        %v1008 = vadd.f32 %v916, %v1007
        %v1009 = vpop.f32.mrb[0].mxu0
        %1010 = vdwg.mxu0
        %v1011 = vmax.f32 %v998, 0.0
        %v1012 = vmax.f32 %v1003, 0.0
        %v1013 = vmax.f32 %v1008, 0.0
        %v1014 = vld [vmem:[%s3 + $0xd0] sm:$0xff]
        %v1015 = vld [vmem:[%s3 + $0xd8] sm:$0xf]
        %v1016 = vld [vmem:[%s4 + $0x4] ss:$0 sm:$0xff]
        %v1018 = vsel %vm917, %v1011, 0
        %v1021 = vsel %vm917, %v1012, 0
        %v1024 = vsel %vm917, %v1013, 0
        %v1027 = vsel %vm927, %v1015, 0
        %1029 = vmatprep.subr.mxu0 0.0
        %1030 = vmatpush1.msra.mxu0 %v1014
        %1031 = vmatprep.subr.mxu0 0.0
        %1032 = vmatpush1.msra.mxu0 %v1027
        %1033 = vmatprep.subr.mxu0 0.0
        %1034 = vmatpush1.msra.mxu0 0.0
        %1035 = vmatprep.subr.mxu0 0.0
        %1036 = vmatpush1.msra.mxu0 0.0
        %1037 = vmatprep.subr.mxu0 0.0
        %1038 = vmatpush1.msra.mxu0 0.0
        %1039 = vmatprep.subr.mxu0 0.0
        %1040 = vmatpush1.msra.mxu0 0.0
        %1041 = vmatprep.subr.mxu0 0.0
        %1042 = vmatpush1.msra.mxu0 0.0
        %1043 = vmatprep.subr.mxu0 0.0
        %1044 = vmatpush1.msra.mxu0 0.0
        %1045 = vmatprep.subr.mxu0 0.0
        %1046 = vmatpush1.msra.mxu0 0.0
        %1047 = vmatprep.subr.mxu0 0.0
        %1048 = vmatpush1.msra.mxu0 0.0
        %1049 = vmatprep.subr.mxu0 0.0
        %1050 = vmatpush1.msra.mxu0 0.0
        %1051 = vmatprep.subr.mxu0 0.0
        %1052 = vmatpush1.msra.mxu0 0.0
        %1053 = vmatprep.subr.mxu0 0.0
        %1054 = vmatpush1.msra.mxu0 0.0
        %1055 = vmatprep.subr.mxu0 0.0
        %1056 = vmatpush1.msra.mxu0 0.0
        %1057 = vmatprep.subr.mxu0 0.0
        %1058 = vmatpush1.msra.mxu0 0.0
        %1059 = vmatprep.subr.mxu0 0.0
        %1060 = vmatpush1.msra.mxu0 0.0
        %1061 = vmatprep.subr.mxu0 0.0
        %1062 = vmatpush1.msra.mxu0 0.0
        %1063 = vmatprep.subr.mxu0 0.0
        %1064 = vmatpush1.msra.mxu0 0.0
        %1065 = vmatprep.subr.mxu0 0.0
        %1066 = vmatpush1.msra.mxu0 0.0
        %1067 = vmatprep.subr.mxu0 0.0
        %1068 = vmatpush1.msra.mxu0 0.0
        %1069 = vmatprep.subr.mxu0 0.0
        %1070 = vmatpush1.msra.mxu0 0.0
        %1071 = vmatprep.subr.mxu0 0.0
        %1072 = vmatpush1.msra.mxu0 0.0
        %1073 = vmatprep.subr.mxu0 0.0
        %1074 = vmatpush1.msra.mxu0 0.0
        %1075 = vmatprep.subr.mxu0 0.0
        %1076 = vmatpush1.msra.mxu0 0.0
        %1077 = vmatprep.subr.mxu0 0.0
        %1078 = vmatpush1.msra.mxu0 0.0
        %1079 = vmatprep.subr.mxu0 0.0
        %1080 = vmatpush1.msra.mxu0 0.0
        %1081 = vmatprep.subr.mxu0 0.0
        %1082 = vmatpush1.msra.mxu0 0.0
        %1083 = vmatprep.subr.mxu0 0.0
        %1084 = vmatpush1.msra.mxu0 0.0
        %1085 = vmatprep.subr.mxu0 0.0
        %1086 = vmatpush1.msra.mxu0 0.0
        %1087 = vmatprep.subr.mxu0 0.0
        %1088 = vmatpush1.msra.mxu0 0.0
        %1089 = vmatprep.subr.mxu0 0.0
        %1090 = vmatpush1.msra.mxu0 0.0
        %1091 = vmatprep.subr.mxu0 0.0
        %1092 = vmatpush1.msra.mxu0 0.0
        %1093 = vmatprep.mubr.f32.mxu0 0.0
        %1094 = vmatmul.mubr.f32.gmra.mrb[0].mxu0 %v1018
        %v1095 = vpop.f32.mrb[0].mxu0
        %v1096 = vadd.f32 %v1016, %v1095
        %v1097 = vpop.f32.mrb[0].mxu0
        %1098 = vmatprep.mubr.f32.mxu0 0.0
        %1099 = vmatmul.mubr.f32.gmra.mrb[0].mxu0 %v1021
        %v1100 = vpop.f32.mrb[0].mxu0
        %v1101 = vadd.f32 %v1016, %v1100
        %v1102 = vpop.f32.mrb[0].mxu0
        %1103 = vmatprep.mubr.f32.mxu0 0.0
        %1104 = vmatmul.mubr.f32.gmra.mrb[0].mxu0 %v1024
        %v1105 = vpop.f32.mrb[0].mxu0
        %v1106 = vadd.f32 %v1016, %v1105
        %v1107 = vpop.f32.mrb[0].mxu0
        %1108 = vdwg.mxu0
        %v1109 = vmax.f32 %v1096, 0.0
        %v1110 = vmax.f32 %v1101, 0.0
        %v1111 = vmax.f32 %v1106, 0.0
        %v1112 = vld [vmem:[%s3 + $0xe0] sm:$0xff]
        %v1113 = vld [vmem:[%s3 + $0xe8] sm:$0xff]
        %v1114 = vld [vmem:[%s3 + $0xf0] sm:$0xff]
        %v1115 = vld [vmem:[%s3 + $0xf8] sm:$0xff]
        %v1116 = vld [vmem:[%s3 + $0x100] sm:$0xff]
        %v1117 = vld [vmem:[%s3 + $0x108] sm:$0xff]
        %v1118 = vld [vmem:[%s3 + $0x110] sm:$0xff]
        %v1119 = vld [vmem:[%s3 + $0x118] sm:$0xff]
        %v1120 = vld [vmem:[%s4 + $0x5] ss:$0 sm:$0xff]
        %v1122 = vsel %vm821, %v1109, 0
        %v1125 = vsel %vm821, %v1110, 0
        %v1128 = vsel %vm821, %v1111, 0
        %1130 = vmatprep.subr.mxu0 0.0
        %1131 = vmatpush1.msra.mxu0 %v1112
        %1132 = vmatprep.subr.mxu0 0.0
        %1133 = vmatpush1.msra.mxu0 %v1113
        %1134 = vmatprep.subr.mxu0 0.0
        %1135 = vmatpush1.msra.mxu0 %v1114
        %1136 = vmatprep.subr.mxu0 0.0
        %1137 = vmatpush1.msra.mxu0 %v1115
        %1138 = vmatprep.subr.mxu0 0.0
        %1139 = vmatpush1.msra.mxu0 %v1116
        %1140 = vmatprep.subr.mxu0 0.0
        %1141 = vmatpush1.msra.mxu0 %v1117
        %1142 = vmatprep.subr.mxu0 0.0
        %1143 = vmatpush1.msra.mxu0 %v1118
        %1144 = vmatprep.subr.mxu0 0.0
        %1145 = vmatpush1.msra.mxu0 %v1119
        %1146 = vmatprep.subr.mxu0 0.0
        %1147 = vmatpush1.msra.mxu0 0.0
        %1148 = vmatprep.subr.mxu0 0.0
        %1149 = vmatpush1.msra.mxu0 0.0
        %1150 = vmatprep.subr.mxu0 0.0
        %1151 = vmatpush1.msra.mxu0 0.0
        %1152 = vmatprep.subr.mxu0 0.0
        %1153 = vmatpush1.msra.mxu0 0.0
        %1154 = vmatprep.subr.mxu0 0.0
        %1155 = vmatpush1.msra.mxu0 0.0
        %1156 = vmatprep.subr.mxu0 0.0
        %1157 = vmatpush1.msra.mxu0 0.0
        %1158 = vmatprep.subr.mxu0 0.0
        %1159 = vmatpush1.msra.mxu0 0.0
        %1160 = vmatprep.subr.mxu0 0.0
        %1161 = vmatpush1.msra.mxu0 0.0
        %1162 = vmatprep.subr.mxu0 0.0
        %1163 = vmatpush1.msra.mxu0 0.0
        %1164 = vmatprep.subr.mxu0 0.0
        %1165 = vmatpush1.msra.mxu0 0.0
        %1166 = vmatprep.subr.mxu0 0.0
        %1167 = vmatpush1.msra.mxu0 0.0
        %1168 = vmatprep.subr.mxu0 0.0
        %1169 = vmatpush1.msra.mxu0 0.0
        %1170 = vmatprep.subr.mxu0 0.0
        %1171 = vmatpush1.msra.mxu0 0.0
        %1172 = vmatprep.subr.mxu0 0.0
        %1173 = vmatpush1.msra.mxu0 0.0
        %1174 = vmatprep.subr.mxu0 0.0
        %1175 = vmatpush1.msra.mxu0 0.0
        %1176 = vmatprep.subr.mxu0 0.0
        %1177 = vmatpush1.msra.mxu0 0.0
        %1178 = vmatprep.subr.mxu0 0.0
        %1179 = vmatpush1.msra.mxu0 0.0
        %1180 = vmatprep.subr.mxu0 0.0
        %1181 = vmatpush1.msra.mxu0 0.0
        %1182 = vmatprep.subr.mxu0 0.0
        %1183 = vmatpush1.msra.mxu0 0.0
        %1184 = vmatprep.subr.mxu0 0.0
        %1185 = vmatpush1.msra.mxu0 0.0
        %1186 = vmatprep.subr.mxu0 0.0
        %1187 = vmatpush1.msra.mxu0 0.0
        %1188 = vmatprep.subr.mxu0 0.0
        %1189 = vmatpush1.msra.mxu0 0.0
        %1190 = vmatprep.subr.mxu0 0.0
        %1191 = vmatpush1.msra.mxu0 0.0
        %1192 = vmatprep.subr.mxu0 0.0
        %1193 = vmatpush1.msra.mxu0 0.0
        %1194 = vmatprep.mubr.f32.mxu0 0.0
        %1195 = vmatmul.mubr.f32.gmra.mrb[0].mxu0 %v1122
        %v1196 = vpop.f32.mrb[0].mxu0
        %v1197 = vadd.f32 %v1120, %v1196
        %v1198 = vpop.f32.mrb[0].mxu0
        %1199 = vmatprep.mubr.f32.mxu0 0.0
        %1200 = vmatmul.mubr.f32.gmra.mrb[0].mxu0 %v1125
        %v1201 = vpop.f32.mrb[0].mxu0
        %v1202 = vadd.f32 %v1120, %v1201
        %v1203 = vpop.f32.mrb[0].mxu0
        %1204 = vmatprep.mubr.f32.mxu0 0.0
        %1205 = vmatmul.mubr.f32.gmra.mrb[0].mxu0 %v1128
        %v1206 = vpop.f32.mrb[0].mxu0
        %v1207 = vadd.f32 %v1120, %v1206
        %v1208 = vpop.f32.mrb[0].mxu0
        %1209 = vdwg.mxu0
        %v1210 = vmax.f32 %v1197, 0.0
        %v1211 = vmax.f32 %v1202, 0.0
        %v1212 = vmax.f32 %v1207, 0.0
        %v1213 = vld [vmem:[%s2] sm:$0xff]
        %v1214 = vld [vmem:[%s2 + $0x8] sm:$0xff]
        %v1215 = vld [vmem:[%s2 + $0x10] sm:$0xff]
        %v1216 = vld [vmem:[%s2 + $0x18] sm:$0xff]
        %v1217 = vld [vmem:[%s2 + $0x20] sm:$0xff]
        %v1218 = vld [vmem:[%s2 + $0x28] sm:$0xff]
        %v1219 = vld [vmem:[%s2 + $0x30] sm:$0xff]
        %v1220 = vld [vmem:[%s2 + $0x38] sm:$0xff]
        %v1221 = vld [vmem:[%s2 + $0x40] sm:$0xff]
        %v1222 = vld [vmem:[%s2 + $0x48] sm:$0xff]
        %v1223 = vld [vmem:[%s2 + $0x50] sm:$0xff]
        %v1224 = vld [vmem:[%s2 + $0x58] sm:$0xff]
        %v1225 = vld [vmem:[%s2 + $0x60] sm:$0xff]
        %v1226 = vld [vmem:[%s2 + $0x68] sm:$0xff]
        %v1227 = vld [vmem:[%s2 + $0x70] sm:$0xff]
        %v1228 = vld [vmem:[%s2 + $0x78] sm:$0xff]
        %v1229 = vld [vmem:[%s2 + $0x80] sm:$0xff]
        %v1230 = vld [vmem:[%s2 + $0x88] sm:$0xff]
        %v1231 = vld [vmem:[%s2 + $0x90] sm:$0xff]
        %v1232 = vld [vmem:[%s2 + $0x98] sm:$0xff]
        %v1233 = vld [vmem:[%s2 + $0xa0] sm:$0xff]
        %v1234 = vld [vmem:[%s2 + $0xa8] sm:$0xff]
        %v1235 = vld [vmem:[%s2 + $0xb0] sm:$0xff]
        %v1236 = vld [vmem:[%s2 + $0xb8] sm:$0xff]
        %v1237 = vld [vmem:[%s2 + $0xc0] sm:$0xff]
        %v1238 = vld [vmem:[%s2 + $0xc8] sm:$0xff]
        %v1239 = vld [vmem:[%s2 + $0xd0] sm:$0xff]
        %v1240 = vld [vmem:[%s2 + $0xd8] sm:$0xff]
        %v1241 = vld [vmem:[%s2 + $0xe0] sm:$0xff]
        %v1242 = vld [vmem:[%s2 + $0xe8] sm:$0xff]
        %v1243 = vld [vmem:[%s2 + $0xf0] sm:$0xff]
        %v1244 = vld [vmem:[%s2 + $0xf8] sm:$0xff]
        %v1245 = vld [vmem:[%s2 + $0x100] sm:$0xff]
        %v1246 = vld [vmem:[%s2 + $0x108] sm:$0xff]
        %v1247 = vld [vmem:[%s2 + $0x110] sm:$0xff]
        %v1248 = vld [vmem:[%s2 + $0x118] sm:$0xff]
        %v1249 = vld [vmem:[%s2 + $0x120] sm:$0xff]
        %v1250 = vld [vmem:[%s2 + $0x128] sm:$0xff]
        %v1251 = vld [vmem:[%s2 + $0x130] sm:$0xff]
        %v1252 = vld [vmem:[%s2 + $0x138] sm:$0xff]
        %v1253 = vld [vmem:[%s2 + $0x140] sm:$0xff]
        %v1254 = vld [vmem:[%s2 + $0x148] sm:$0xff]
        %v1255 = vld [vmem:[%s2 + $0x150] sm:$0xff]
        %v1256 = vld [vmem:[%s2 + $0x158] sm:$0xff]
        %v1257 = vld [vmem:[%s2 + $0x160] sm:$0xff]
        %v1258 = vld [vmem:[%s2 + $0x168] sm:$0xff]
        %v1259 = vld [vmem:[%s2 + $0x170] sm:$0xff]
        %v1260 = vld [vmem:[%s2 + $0x178] sm:$0xff]
        %v1261 = vld [vmem:[%s2 + $0x180] sm:$0xff]
        %v1262 = vld [vmem:[%s2 + $0x188] sm:$0xff]
        %v1263 = vld [vmem:[%s2 + $0x190] sm:$0xff]
        %v1264 = vld [vmem:[%s2 + $0x198] sm:$0xff]
        %v1265 = vld [vmem:[%s2 + $0x1a0] sm:$0xff]
        %v1266 = vld [vmem:[%s2 + $0x1a8] sm:$0xff]
        %v1267 = vld [vmem:[%s2 + $0x1b0] sm:$0xff]
        %v1268 = vld [vmem:[%s2 + $0x1b8] sm:$0xff]
        %v1269 = vld [vmem:[%s2 + $0x1c0] sm:$0xff]
        %v1270 = vld [vmem:[%s2 + $0x1c8] sm:$0xff]
        %v1271 = vld [vmem:[%s2 + $0x1d0] sm:$0xff]
        %v1272 = vld [vmem:[%s2 + $0x1d8] sm:$0xff]
        %v1273 = vld [vmem:[%s2 + $0x1e0] sm:$0xff]
        %v1274 = vld [vmem:[%s2 + $0x1e8] sm:$0xff]
        %v1275 = vld [vmem:[%s2 + $0x1f0] sm:$0xff]
        %v1276 = vld [vmem:[%s2 + $0x1f8] sm:$0xff]
        %v1277 = vld [vmem:[%s2 + $0x200] sm:$0xff]
        %v1278 = vld [vmem:[%s2 + $0x208] sm:$0xff]
        %v1279 = vld [vmem:[%s2 + $0x210] sm:$0xff]
        %v1280 = vld [vmem:[%s2 + $0x218] sm:$0xff]
        %v1281 = vld [vmem:[%s2 + $0x220] sm:$0xff]
        %v1282 = vld [vmem:[%s2 + $0x228] sm:$0xff]
        %v1283 = vld [vmem:[%s2 + $0x230] sm:$0xff]
        %v1284 = vld [vmem:[%s2 + $0x238] sm:$0xff]
        %v1285 = vld [vmem:[%s2 + $0x240] sm:$0xff]
        %v1286 = vld [vmem:[%s2 + $0x248] sm:$0xff]
        %v1287 = vld [vmem:[%s2 + $0x250] sm:$0xff]
        %v1288 = vld [vmem:[%s2 + $0x258] sm:$0xff]
        %v1289 = vld [vmem:[%s2 + $0x260] sm:$0xff]
        %v1290 = vld [vmem:[%s2 + $0x268] sm:$0xff]
        %v1291 = vld [vmem:[%s2 + $0x270] sm:$0xff]
        %v1292 = vld [vmem:[%s2 + $0x278] sm:$0xff]
        %v1293 = vld [vmem:[%s2 + $0x280] sm:$0xff]
        %v1294 = vld [vmem:[%s2 + $0x288] sm:$0xff]
        %v1295 = vld [vmem:[%s2 + $0x290] sm:$0xff]
        %v1296 = vld [vmem:[%s2 + $0x298] sm:$0xff]
        %v1297 = vld [vmem:[%s2 + $0x2a0] sm:$0xff]
        %v1298 = vld [vmem:[%s2 + $0x2a8] sm:$0xff]
        %v1299 = vld [vmem:[%s2 + $0x2b0] sm:$0xff]
        %v1300 = vld [vmem:[%s2 + $0x2b8] sm:$0xff]
        %v1301 = vld [vmem:[%s2 + $0x2c0] sm:$0xff]
        %v1302 = vld [vmem:[%s2 + $0x2c8] sm:$0xff]
        %v1303 = vld [vmem:[%s2 + $0x2d0] sm:$0xff]
        %v1304 = vld [vmem:[%s2 + $0x2d8] sm:$0xff]
        %v1305 = vld [vmem:[%s2 + $0x2e0] sm:$0xff]
        %v1306 = vld [vmem:[%s2 + $0x2e8] sm:$0xff]
        %v1307 = vld [vmem:[%s2 + $0x2f0] sm:$0xff]
        %v1308 = vld [vmem:[%s2 + $0x2f8] sm:$0xff]
        %v1309 = vld [vmem:[%s2 + $0x300] sm:$0xff]
        %v1310 = vld [vmem:[%s2 + $0x308] sm:$0xff]
        %v1311 = vld [vmem:[%s2 + $0x310] sm:$0xff]
        %v1312 = vld [vmem:[%s2 + $0x318] sm:$0xff]
        %v1313 = vld [vmem:[%s2 + $0x320] sm:$0xff]
        %v1314 = vld [vmem:[%s2 + $0x328] sm:$0xff]
        %v1315 = vld [vmem:[%s2 + $0x330] sm:$0xff]
        %v1316 = vld [vmem:[%s2 + $0x338] sm:$0xff]
        %v1317 = vld [vmem:[%s2 + $0x340] sm:$0xff]
        %v1318 = vld [vmem:[%s2 + $0x348] sm:$0xff]
        %v1319 = vld [vmem:[%s2 + $0x350] sm:$0xff]
        %v1320 = vld [vmem:[%s2 + $0x358] sm:$0xff]
        %v1321 = vld [vmem:[%s2 + $0x360] sm:$0xff]
        %v1322 = vld [vmem:[%s2 + $0x368] sm:$0xff]
        %v1323 = vld [vmem:[%s2 + $0x370] sm:$0xff]
        %v1324 = vld [vmem:[%s2 + $0x378] sm:$0xff]
        %s1325 = scalar_lea.vmem %s4, 6
        %v1326 = vld [vmem:[%s1325] ss:$8 sm:$0xf]
        %v1327 = vld [vmem:[%s1325] ss:$8 sm:$0x70]
        %v1328 = vor.u32 %v1326, %v1327
        %v1330 = vlaneseq
        %v1331 = vshrl.u32 %v1330, 7
        %v1332 = vsub.s32 0, %v1331
        %v1333 = vrot.slane %v1328, %v1332
        %v1334 = vlaneseq
        %v1335 = vshrl.u32 %v1334, 7
        %v1336 = vsub.s32 1, %v1335
        %v1337 = vrot.slane %v1328, %v1336
        %v1338 = vlaneseq
        %v1339 = vshrl.u32 %v1338, 7
        %v1340 = vsub.s32 2, %v1339
        %v1341 = vrot.slane %v1328, %v1340
        %v1342 = vlaneseq
        %v1343 = vshrl.u32 %v1342, 7
        %v1344 = vsub.s32 3, %v1343
        %v1345 = vrot.slane %v1328, %v1344
        %v1346 = vlaneseq
        %v1347 = vshrl.u32 %v1346, 7
        %v1348 = vsub.s32 4, %v1347
        %v1349 = vrot.slane %v1328, %v1348
        %v1350 = vlaneseq
        %v1351 = vshrl.u32 %v1350, 7
        %v1352 = vsub.s32 5, %v1351
        %v1353 = vrot.slane %v1328, %v1352
        %v1354 = vlaneseq
        %v1355 = vshrl.u32 %v1354, 7
        %v1356 = vsub.s32 6, %v1355
        %v1357 = vrot.slane %v1328, %v1356
        %1365 = vmatprep.subr.mxu0 %v1214
        %1366 = vmatpush1.msra.mxu0 %v1213
        %1367 = vmatprep.subr.mxu0 %v1221
        %1368 = vmatpush1.msra.mxu0 %v1220
        %1369 = vmatprep.subr.mxu0 %v1228
        %1370 = vmatpush1.msra.mxu0 %v1227
        %1371 = vmatprep.subr.mxu0 %v1235
        %1372 = vmatpush1.msra.mxu0 %v1234
        %1373 = vmatprep.subr.mxu0 %v1242
        %1374 = vmatpush1.msra.mxu0 %v1241
        %1375 = vmatprep.subr.mxu0 %v1249
        %1376 = vmatpush1.msra.mxu0 %v1248
        %1377 = vmatprep.subr.mxu0 %v1256
        %1378 = vmatpush1.msra.mxu0 %v1255
        %1379 = vmatprep.subr.mxu0 %v1263
        %1380 = vmatpush1.msra.mxu0 %v1262
        %1381 = vmatprep.subr.mxu0 %v1270
        %1382 = vmatpush1.msra.mxu0 %v1269
        %1383 = vmatprep.subr.mxu0 %v1277
        %1384 = vmatpush1.msra.mxu0 %v1276
        %1385 = vmatprep.subr.mxu0 %v1284
        %1386 = vmatpush1.msra.mxu0 %v1283
        %1387 = vmatprep.subr.mxu0 %v1291
        %1388 = vmatpush1.msra.mxu0 %v1290
        %1389 = vmatprep.subr.mxu0 %v1298
        %1390 = vmatpush1.msra.mxu0 %v1297
        %1391 = vmatprep.subr.mxu0 %v1305
        %1392 = vmatpush1.msra.mxu0 %v1304
        %1393 = vmatprep.subr.mxu0 %v1312
        %1394 = vmatpush1.msra.mxu0 %v1311
        %1395 = vmatprep.subr.mxu0 %v1319
        %1396 = vmatpush1.msra.mxu0 %v1318
        %1397 = vmatprep.subr.mxu0 0.0
        %1398 = vmatpush1.msra.mxu0 0.0
        %1399 = vmatprep.subr.mxu0 0.0
        %1400 = vmatpush1.msra.mxu0 0.0
        %1401 = vmatprep.subr.mxu0 0.0
        %1402 = vmatpush1.msra.mxu0 0.0
        %1403 = vmatprep.subr.mxu0 0.0
        %1404 = vmatpush1.msra.mxu0 0.0
        %1405 = vmatprep.subr.mxu0 0.0
        %1406 = vmatpush1.msra.mxu0 0.0
        %1407 = vmatprep.subr.mxu0 0.0
        %1408 = vmatpush1.msra.mxu0 0.0
        %1409 = vmatprep.subr.mxu0 0.0
        %1410 = vmatpush1.msra.mxu0 0.0
        %1411 = vmatprep.subr.mxu0 0.0
        %1412 = vmatpush1.msra.mxu0 0.0
        %1413 = vmatprep.subr.mxu0 0.0
        %1414 = vmatpush1.msra.mxu0 0.0
        %1415 = vmatprep.subr.mxu0 0.0
        %1416 = vmatpush1.msra.mxu0 0.0
        %1417 = vmatprep.subr.mxu0 0.0
        %1418 = vmatpush1.msra.mxu0 0.0
        %1419 = vmatprep.subr.mxu0 0.0
        %1420 = vmatpush1.msra.mxu0 0.0
        %1421 = vmatprep.subr.mxu0 0.0
        %1422 = vmatpush1.msra.mxu0 0.0
        %1423 = vmatprep.subr.mxu0 0.0
        %1424 = vmatpush1.msra.mxu0 0.0
        %1425 = vmatprep.subr.mxu0 0.0
        %1426 = vmatpush1.msra.mxu0 0.0
        %1427 = vmatprep.subr.mxu0 0.0
        %1428 = vmatpush1.msra.mxu0 0.0
        %1429 = vmatprep.mubr.f32.mxu0 0.0
        %1430 = vmatmul.mubr.f32.gmra.mrb[0].mxu0 %v1210
        %v1431 = vpop.f32.mrb[0].mxu0
        %v1432 = vadd.f32 %v1333, %v1431
        %v1433 = vpop.f32.mrb[0].mxu0
        %v1434 = vadd.f32 %v1337, %v1433
        %1435 = vmatprep.mubr.f32.mxu0 0.0
        %1436 = vmatmul.mubr.f32.gmra.mrb[0].mxu0 %v1211
        %v1437 = vpop.f32.mrb[0].mxu0
        %v1438 = vadd.f32 %v1333, %v1437
        %v1439 = vpop.f32.mrb[0].mxu0
        %v1440 = vadd.f32 %v1337, %v1439
        %1441 = vmatprep.mubr.f32.mxu0 0.0
        %1442 = vmatmul.mubr.f32.gmra.mrb[0].mxu0 %v1212
        %v1443 = vpop.f32.mrb[0].mxu0
        %v1444 = vadd.f32 %v1333, %v1443
        %v1445 = vpop.f32.mrb[0].mxu0
        %v1446 = vadd.f32 %v1337, %v1445
        %1447 = vdwg.mxu0
        %1448 = vmatprep.subr.mxu0 %v1216
        %1449 = vmatpush1.msra.mxu0 %v1215
        %1450 = vmatprep.subr.mxu0 %v1223
        %1451 = vmatpush1.msra.mxu0 %v1222
        %1452 = vmatprep.subr.mxu0 %v1230
        %1453 = vmatpush1.msra.mxu0 %v1229
        %1454 = vmatprep.subr.mxu0 %v1237
        %1455 = vmatpush1.msra.mxu0 %v1236
        %1456 = vmatprep.subr.mxu0 %v1244
        %1457 = vmatpush1.msra.mxu0 %v1243
        %1458 = vmatprep.subr.mxu0 %v1251
        %1459 = vmatpush1.msra.mxu0 %v1250
        %1460 = vmatprep.subr.mxu0 %v1258
        %1461 = vmatpush1.msra.mxu0 %v1257
        %1462 = vmatprep.subr.mxu0 %v1265
        %1463 = vmatpush1.msra.mxu0 %v1264
        %1464 = vmatprep.subr.mxu0 %v1272
        %1465 = vmatpush1.msra.mxu0 %v1271
        %1466 = vmatprep.subr.mxu0 %v1279
        %1467 = vmatpush1.msra.mxu0 %v1278
        %1468 = vmatprep.subr.mxu0 %v1286
        %1469 = vmatpush1.msra.mxu0 %v1285
        %1470 = vmatprep.subr.mxu0 %v1293
        %1471 = vmatpush1.msra.mxu0 %v1292
        %1472 = vmatprep.subr.mxu0 %v1300
        %1473 = vmatpush1.msra.mxu0 %v1299
        %1474 = vmatprep.subr.mxu0 %v1307
        %1475 = vmatpush1.msra.mxu0 %v1306
        %1476 = vmatprep.subr.mxu0 %v1314
        %1477 = vmatpush1.msra.mxu0 %v1313
        %1478 = vmatprep.subr.mxu0 %v1321
        %1479 = vmatpush1.msra.mxu0 %v1320
        %1480 = vmatprep.subr.mxu0 0.0
        %1481 = vmatpush1.msra.mxu0 0.0
        %1482 = vmatprep.subr.mxu0 0.0
        %1483 = vmatpush1.msra.mxu0 0.0
        %1484 = vmatprep.subr.mxu0 0.0
        %1485 = vmatpush1.msra.mxu0 0.0
        %1486 = vmatprep.subr.mxu0 0.0
        %1487 = vmatpush1.msra.mxu0 0.0
        %1488 = vmatprep.subr.mxu0 0.0
        %1489 = vmatpush1.msra.mxu0 0.0
        %1490 = vmatprep.subr.mxu0 0.0
        %1491 = vmatpush1.msra.mxu0 0.0
        %1492 = vmatprep.subr.mxu0 0.0
        %1493 = vmatpush1.msra.mxu0 0.0
        %1494 = vmatprep.subr.mxu0 0.0
        %1495 = vmatpush1.msra.mxu0 0.0
        %1496 = vmatprep.subr.mxu0 0.0
        %1497 = vmatpush1.msra.mxu0 0.0
        %1498 = vmatprep.subr.mxu0 0.0
        %1499 = vmatpush1.msra.mxu0 0.0
        %1500 = vmatprep.subr.mxu0 0.0
        %1501 = vmatpush1.msra.mxu0 0.0
        %1502 = vmatprep.subr.mxu0 0.0
        %1503 = vmatpush1.msra.mxu0 0.0
        %1504 = vmatprep.subr.mxu0 0.0
        %1505 = vmatpush1.msra.mxu0 0.0
        %1506 = vmatprep.subr.mxu0 0.0
        %1507 = vmatpush1.msra.mxu0 0.0
        %1508 = vmatprep.subr.mxu0 0.0
        %1509 = vmatpush1.msra.mxu0 0.0
        %1510 = vmatprep.subr.mxu0 0.0
        %1511 = vmatpush1.msra.mxu0 0.0
        %1512 = vmatprep.mubr.f32.mxu0 0.0
        %1513 = vmatmul.mubr.f32.gmra.mrb[0].mxu0 %v1210
        %v1514 = vpop.f32.mrb[0].mxu0
        %v1515 = vadd.f32 %v1341, %v1514
        %v1516 = vpop.f32.mrb[0].mxu0
        %v1517 = vadd.f32 %v1345, %v1516
        %1518 = vmatprep.mubr.f32.mxu0 0.0
        %1519 = vmatmul.mubr.f32.gmra.mrb[0].mxu0 %v1211
        %v1520 = vpop.f32.mrb[0].mxu0
        %v1521 = vadd.f32 %v1341, %v1520
        %v1522 = vpop.f32.mrb[0].mxu0
        %v1523 = vadd.f32 %v1345, %v1522
        %1524 = vmatprep.mubr.f32.mxu0 0.0
        %1525 = vmatmul.mubr.f32.gmra.mrb[0].mxu0 %v1212
        %v1526 = vpop.f32.mrb[0].mxu0
        %v1527 = vadd.f32 %v1341, %v1526
        %v1528 = vpop.f32.mrb[0].mxu0
        %v1529 = vadd.f32 %v1345, %v1528
        %1530 = vdwg.mxu0
        %1531 = vmatprep.subr.mxu0 %v1218
        %1532 = vmatpush1.msra.mxu0 %v1217
        %1533 = vmatprep.subr.mxu0 %v1225
        %1534 = vmatpush1.msra.mxu0 %v1224
        %1535 = vmatprep.subr.mxu0 %v1232
        %1536 = vmatpush1.msra.mxu0 %v1231
        %1537 = vmatprep.subr.mxu0 %v1239
        %1538 = vmatpush1.msra.mxu0 %v1238
        %1539 = vmatprep.subr.mxu0 %v1246
        %1540 = vmatpush1.msra.mxu0 %v1245
        %1541 = vmatprep.subr.mxu0 %v1253
        %1542 = vmatpush1.msra.mxu0 %v1252
        %1543 = vmatprep.subr.mxu0 %v1260
        %1544 = vmatpush1.msra.mxu0 %v1259
        %1545 = vmatprep.subr.mxu0 %v1267
        %1546 = vmatpush1.msra.mxu0 %v1266
        %1547 = vmatprep.subr.mxu0 %v1274
        %1548 = vmatpush1.msra.mxu0 %v1273
        %1549 = vmatprep.subr.mxu0 %v1281
        %1550 = vmatpush1.msra.mxu0 %v1280
        %1551 = vmatprep.subr.mxu0 %v1288
        %1552 = vmatpush1.msra.mxu0 %v1287
        %1553 = vmatprep.subr.mxu0 %v1295
        %1554 = vmatpush1.msra.mxu0 %v1294
        %1555 = vmatprep.subr.mxu0 %v1302
        %1556 = vmatpush1.msra.mxu0 %v1301
        %1557 = vmatprep.subr.mxu0 %v1309
        %1558 = vmatpush1.msra.mxu0 %v1308
        %1559 = vmatprep.subr.mxu0 %v1316
        %1560 = vmatpush1.msra.mxu0 %v1315
        %1561 = vmatprep.subr.mxu0 %v1323
        %1562 = vmatpush1.msra.mxu0 %v1322
        %1563 = vmatprep.subr.mxu0 0.0
        %1564 = vmatpush1.msra.mxu0 0.0
        %1565 = vmatprep.subr.mxu0 0.0
        %1566 = vmatpush1.msra.mxu0 0.0
        %1567 = vmatprep.subr.mxu0 0.0
        %1568 = vmatpush1.msra.mxu0 0.0
        %1569 = vmatprep.subr.mxu0 0.0
        %1570 = vmatpush1.msra.mxu0 0.0
        %1571 = vmatprep.subr.mxu0 0.0
        %1572 = vmatpush1.msra.mxu0 0.0
        %1573 = vmatprep.subr.mxu0 0.0
        %1574 = vmatpush1.msra.mxu0 0.0
        %1575 = vmatprep.subr.mxu0 0.0
        %1576 = vmatpush1.msra.mxu0 0.0
        %1577 = vmatprep.subr.mxu0 0.0
        %1578 = vmatpush1.msra.mxu0 0.0
        %1579 = vmatprep.subr.mxu0 0.0
        %1580 = vmatpush1.msra.mxu0 0.0
        %1581 = vmatprep.subr.mxu0 0.0
        %1582 = vmatpush1.msra.mxu0 0.0
        %1583 = vmatprep.subr.mxu0 0.0
        %1584 = vmatpush1.msra.mxu0 0.0
        %1585 = vmatprep.subr.mxu0 0.0
        %1586 = vmatpush1.msra.mxu0 0.0
        %1587 = vmatprep.subr.mxu0 0.0
        %1588 = vmatpush1.msra.mxu0 0.0
        %1589 = vmatprep.subr.mxu0 0.0
        %1590 = vmatpush1.msra.mxu0 0.0
        %1591 = vmatprep.subr.mxu0 0.0
        %1592 = vmatpush1.msra.mxu0 0.0
        %1593 = vmatprep.subr.mxu0 0.0
        %1594 = vmatpush1.msra.mxu0 0.0
        %1595 = vmatprep.mubr.f32.mxu0 0.0
        %1596 = vmatmul.mubr.f32.gmra.mrb[0].mxu0 %v1210
        %v1597 = vpop.f32.mrb[0].mxu0
        %v1598 = vadd.f32 %v1349, %v1597
        %v1599 = vpop.f32.mrb[0].mxu0
        %v1600 = vadd.f32 %v1353, %v1599
        %1601 = vmatprep.mubr.f32.mxu0 0.0
        %1602 = vmatmul.mubr.f32.gmra.mrb[0].mxu0 %v1211
        %v1603 = vpop.f32.mrb[0].mxu0
        %v1604 = vadd.f32 %v1349, %v1603
        %v1605 = vpop.f32.mrb[0].mxu0
        %v1606 = vadd.f32 %v1353, %v1605
        %1607 = vmatprep.mubr.f32.mxu0 0.0
        %1608 = vmatmul.mubr.f32.gmra.mrb[0].mxu0 %v1212
        %v1609 = vpop.f32.mrb[0].mxu0
        %v1610 = vadd.f32 %v1349, %v1609
        %v1611 = vpop.f32.mrb[0].mxu0
        %v1612 = vadd.f32 %v1353, %v1611
        %1613 = vdwg.mxu0
        %1614 = vmatprep.subr.mxu0 0.0
        %1615 = vmatpush1.msra.mxu0 %v1219
        %1616 = vmatprep.subr.mxu0 0.0
        %1617 = vmatpush1.msra.mxu0 %v1226
        %1618 = vmatprep.subr.mxu0 0.0
        %1619 = vmatpush1.msra.mxu0 %v1233
        %1620 = vmatprep.subr.mxu0 0.0
        %1621 = vmatpush1.msra.mxu0 %v1240
        %1622 = vmatprep.subr.mxu0 0.0
        %1623 = vmatpush1.msra.mxu0 %v1247
        %1624 = vmatprep.subr.mxu0 0.0
        %1625 = vmatpush1.msra.mxu0 %v1254
        %1626 = vmatprep.subr.mxu0 0.0
        %1627 = vmatpush1.msra.mxu0 %v1261
        %1628 = vmatprep.subr.mxu0 0.0
        %1629 = vmatpush1.msra.mxu0 %v1268
        %1630 = vmatprep.subr.mxu0 0.0
        %1631 = vmatpush1.msra.mxu0 %v1275
        %1632 = vmatprep.subr.mxu0 0.0
        %1633 = vmatpush1.msra.mxu0 %v1282
        %1634 = vmatprep.subr.mxu0 0.0
        %1635 = vmatpush1.msra.mxu0 %v1289
        %1636 = vmatprep.subr.mxu0 0.0
        %1637 = vmatpush1.msra.mxu0 %v1296
        %1638 = vmatprep.subr.mxu0 0.0
        %1639 = vmatpush1.msra.mxu0 %v1303
        %1640 = vmatprep.subr.mxu0 0.0
        %1641 = vmatpush1.msra.mxu0 %v1310
        %1642 = vmatprep.subr.mxu0 0.0
        %1643 = vmatpush1.msra.mxu0 %v1317
        %1644 = vmatprep.subr.mxu0 0.0
        %1645 = vmatpush1.msra.mxu0 %v1324
        %1646 = vmatprep.subr.mxu0 0.0
        %1647 = vmatpush1.msra.mxu0 0.0
        %1648 = vmatprep.subr.mxu0 0.0
        %1649 = vmatpush1.msra.mxu0 0.0
        %1650 = vmatprep.subr.mxu0 0.0
        %1651 = vmatpush1.msra.mxu0 0.0
        %1652 = vmatprep.subr.mxu0 0.0
        %1653 = vmatpush1.msra.mxu0 0.0
        %1654 = vmatprep.subr.mxu0 0.0
        %1655 = vmatpush1.msra.mxu0 0.0
        %1656 = vmatprep.subr.mxu0 0.0
        %1657 = vmatpush1.msra.mxu0 0.0
        %1658 = vmatprep.subr.mxu0 0.0
        %1659 = vmatpush1.msra.mxu0 0.0
        %1660 = vmatprep.subr.mxu0 0.0
        %1661 = vmatpush1.msra.mxu0 0.0
        %1662 = vmatprep.subr.mxu0 0.0
        %1663 = vmatpush1.msra.mxu0 0.0
        %1664 = vmatprep.subr.mxu0 0.0
        %1665 = vmatpush1.msra.mxu0 0.0
        %1666 = vmatprep.subr.mxu0 0.0
        %1667 = vmatpush1.msra.mxu0 0.0
        %1668 = vmatprep.subr.mxu0 0.0
        %1669 = vmatpush1.msra.mxu0 0.0
        %1670 = vmatprep.subr.mxu0 0.0
        %1671 = vmatpush1.msra.mxu0 0.0
        %1672 = vmatprep.subr.mxu0 0.0
        %1673 = vmatpush1.msra.mxu0 0.0
        %1674 = vmatprep.subr.mxu0 0.0
        %1675 = vmatpush1.msra.mxu0 0.0
        %1676 = vmatprep.subr.mxu0 0.0
        %1677 = vmatpush1.msra.mxu0 0.0
        %1678 = vmatprep.mubr.f32.mxu0 0.0
        %1679 = vmatmul.mubr.f32.gmra.mrb[0].mxu0 %v1210
        %v1680 = vpop.f32.mrb[0].mxu0
        %v1681 = vadd.f32 %v1357, %v1680
        %v1682 = vpop.f32.mrb[0].mxu0
        %1683 = vmatprep.mubr.f32.mxu0 0.0
        %1684 = vmatmul.mubr.f32.gmra.mrb[0].mxu0 %v1211
        %v1685 = vpop.f32.mrb[0].mxu0
        %v1686 = vadd.f32 %v1357, %v1685
        %v1687 = vpop.f32.mrb[0].mxu0
        %1688 = vmatprep.mubr.f32.mxu0 0.0
        %1689 = vmatmul.mubr.f32.gmra.mrb[0].mxu0 %v1212
        %v1690 = vpop.f32.mrb[0].mxu0
        %v1691 = vadd.f32 %v1357, %v1690
        %v1692 = vpop.f32.mrb[0].mxu0
        %1693 = vdwg.mxu0
        %v1694 = vtanh.pop %v1432
        %v1695 = vtanh.pop %v1434
        %v1696 = vtanh.pop %v1515
        %v1697 = vtanh.pop %v1517
        %v1698 = vtanh.pop %v1598
        %v1699 = vtanh.pop %v1600
        %v1700 = vtanh.pop %v1681
        %v1701 = vtanh.pop %v1438
        %v1702 = vtanh.pop %v1440
        %v1703 = vtanh.pop %v1521
        %v1704 = vtanh.pop %v1523
        %v1705 = vtanh.pop %v1604
        %v1706 = vtanh.pop %v1606
        %v1707 = vtanh.pop %v1686
        %v1708 = vtanh.pop %v1444
        %v1709 = vtanh.pop %v1446
        %v1710 = vtanh.pop %v1527
        %v1711 = vtanh.pop %v1529
        %v1712 = vtanh.pop %v1610
        %v1713 = vtanh.pop %v1612
        %v1714 = vtanh.pop %v1691
        %1715 = vst [vmem:[%s235] sm:$0xff] %v1694
        %1716 = vst [vmem:[%s235 + $0x8] sm:$0xff] %v1695
        %1717 = vst [vmem:[%s235 + $0x10] sm:$0xff] %v1696
        %1718 = vst [vmem:[%s235 + $0x18] sm:$0xff] %v1697
        %1719 = vst [vmem:[%s235 + $0x20] sm:$0xff] %v1698
        %1720 = vst [vmem:[%s235 + $0x28] sm:$0xff] %v1699
        %1721 = vst.msk [vmem:[%s235 + $0x30] sm:$0xff] %vm379, %v1700
        %1722 = vst [vmem:[%s235 + $0x38] sm:$0xff] %v1701
        %1723 = vst [vmem:[%s235 + $0x40] sm:$0xff] %v1702
        %1724 = vst [vmem:[%s235 + $0x48] sm:$0xff] %v1703
        %1725 = vst [vmem:[%s235 + $0x50] sm:$0xff] %v1704
        %1726 = vst [vmem:[%s235 + $0x58] sm:$0xff] %v1705
        %1727 = vst [vmem:[%s235 + $0x60] sm:$0xff] %v1706
        %1728 = vst.msk [vmem:[%s235 + $0x68] sm:$0xff] %vm379, %v1707
        %1729 = vst [vmem:[%s235 + $0x70] sm:$0xff] %v1708
        %1730 = vst [vmem:[%s235 + $0x78] sm:$0xff] %v1709
        %1731 = vst [vmem:[%s235 + $0x80] sm:$0xff] %v1710
        %1732 = vst [vmem:[%s235 + $0x88] sm:$0xff] %v1711
        %1733 = vst [vmem:[%s235 + $0x90] sm:$0xff] %v1712
        %1734 = vst [vmem:[%s235 + $0x98] sm:$0xff] %v1713
        %1735 = vst.msk [vmem:[%s235 + $0xa0] sm:$0xff] %vm379, %v1714
        %s1736 = sand.u32 %s137, 1
        %s1737 = scalar_lea.sflag [#allocation3], %s1736
        %s1738 = sand.u32 %s137, 1
        %s1739 = smul.addr %s1738, 168
        %s1740 = scalar_lea.vmem [#allocation2], %s1739
        // Predicated region
        $region41: #{tpu_custom_call.1} parent=39 // pred_check
          %p1741 = pneg %p147
        $region42: #{tpu_custom_call.1} parent=39 // pred_check_branch
          %1743 = sbr.rel (%p1741) target = $region44
        $region43: #{tpu_custom_call.1} parent=39 // pred_region
          %s1744 = smul.u32 3, %s19
          %s1745 = ssub.s32 5, %s1744
          %p1746 = scmp.lt.s32.totalorder %s1745, 3
          %s1747 = scalar_select %p1746, %s1745, 3
          %s1748 = smul.u32 128, %s1747
          %s1749 = smul.u32 %s1748, 7
          %s1751 = ssub.s32 2688, %s1749
          %1752 = vsyncadd %s1737, %s1751
          %p1753 = scmp.ne.s32.totalorder 0, %s1749
          %s1754 = smul.addr %s1744, 7
          %s1755 = smul.addr %s1754, 128
          %s1756 = scalar_lea.hbm %s5, %s1755
          %s1757 = smul.u32 56, %s1747
          %s1758 = sshll.u32 %s1740, 4
          %s1759 = int_to_ptr.vmem [resolvable:$true] %s1758
          %s1760 = sshll.u32 %s1757, 4
          %1764 = dma.vmem_to_hbm [thread:$0]  (%p1753), %s1759, %s1760, %s1756, %s1737, 896, 896, 56
        $region44: #{tpu_custom_call.1} parent=39 // pred_fallthru
          _
      $region40: #{tpu_custom_call.1} parent=5 // pred_fallthru
        _
      %p1765 = scmp.le.s32.totalorder 2, %s14
      // Predicated region
      $region45: #{tpu_custom_call.1} parent=5 // pred_check
        %p1766 = pneg %p1765
      $region46: #{tpu_custom_call.1} parent=5 // pred_check_branch
        %1768 = sbr.rel (%p1766) target = $region48
      $region47: #{tpu_custom_call.1} parent=5 // pred_region
        %s1769 = ssub.s32 %s14, 2
        // Predicated region
        $region49: #{tpu_custom_call.1} parent=47 // pred_check
          %p1770 = pneg %p153
        $region50: #{tpu_custom_call.1} parent=47 // pred_check_branch
          %1772 = sbr.rel (%p1770) target = $region52
        $region51: #{tpu_custom_call.1} parent=47 // pred_region
          %s1773 = sand.u32 %s138, 1
          %s1774 = scalar_lea.sflag [#allocation3], %s1773
          %s1775 = sand.u32 %s138, 1
          %s1776 = smul.addr %s1775, 168
          %s1777 = scalar_lea.vmem [#allocation2], %s1776
          %1778 = dma.done %s1774, 2688
        $region52: #{tpu_custom_call.1} parent=47 // pred_fallthru
          _
      $region48: #{tpu_custom_call.1} parent=5 // pred_fallthru
        _
    $region6: #{tpu_custom_call.1} parent=1 // loop_footer
      %s18 = sadd.s32 1, %s14
    $region7: #{tpu_custom_call.1} parent=1 // loop_footer_branch
      %13 = sbr.rel target = $region3
    $region8: #{tpu_custom_call.1} parent=1 // loop_exit
      _
    %1779 = vsyncpa [#allocation3], 1
    %s1780 = scalar_lea.sflag [#allocation3], 1
    %1781 = vsyncpa %s1780, 1

</llo_original>
